<compile_context>
chip_gen: v7x
topology: tpu7x:2x2x1
jax: 0.10.0
libtpu: 0.0.40
codegen_flags: <defaults>
</compile_context>

<pallas_src>
import jax
import jax.numpy as jnp
from jax.experimental import pallas as pl
from jax.experimental.pallas import tpu as pltpu

VMEM_LIMIT_BYTES = 32 * 1024 * 1024   # safe on v5e/v6e/v7x; tiles use < ~8 MiB
CONV_TILE_M = 2048                    # pooled-output lanes per conv grid step
FC_TILE_M = 1024                      # batch rows per fc grid step


def _round_up(n, m):
    return (n + m - 1) // m * m


def _pad_and_tile(m, unit, target):
    """Pad `m` to a multiple of `unit` and pick a tile size (multiple of
    `unit`, at most `target`).  Prefers >=2 grid steps (so v7x's second
    TensorCore is used on the 'parallel' axis) and balances tile sizes to keep
    padding small."""
    m_pad = _round_up(m, unit)
    if m_pad <= unit:
        return m_pad, m_pad                       # single tiny step
    steps = max(2, pl.cdiv(m_pad, target))
    tile = _round_up(pl.cdiv(m_pad, steps), unit)
    return tile * steps, tile


# ----------------------------- Pallas kernels ------------------------------

def _conv_relu_pool_kernel(w_ref, b_ref, p_ref, o_ref):
    # w_ref: (Cout_pad, K_pad)   bf16  (resident across the grid)
    # b_ref: (Cout_pad, 1)       f32   (resident across the grid)
    # p_ref: (4, K_pad, tile_m)  bf16  transposed im2col, one block per pool
    #                                  phase; lane axis = pooled positions.
    # Running max over the 4 phases keeps <=2 live f32 accumulators (instead
    # of 4), which is what lets tile_m be 2048 without vreg spills.
    w = w_ref[...]
    acc = jnp.dot(w, p_ref[0], preferred_element_type=jnp.float32)
    for ph in range(1, 4):
        acc = jnp.maximum(
            acc, jnp.dot(w, p_ref[ph], preferred_element_type=jnp.float32))
    # f32 epilogue on the accumulator (keep: v5e VPU has no bf16 path).
    o_ref[...] = jnp.maximum(acc + b_ref[...], 0.0).astype(o_ref.dtype)


def _mlp_kernel(x_ref, w1_ref, b1_ref, w2_ref, b2_ref, w3_ref, b3_ref, o_ref):
    # Three matmuls back-to-back from VMEM; bf16 operands, f32 epilogues.
    h = jnp.dot(x_ref[...], w1_ref[...], preferred_element_type=jnp.float32)
    h = jnp.maximum(h + b1_ref[...], 0.0)
    h = jnp.dot(h.astype(w2_ref.dtype), w2_ref[...],
                preferred_element_type=jnp.float32)
    h = jnp.maximum(h + b2_ref[...], 0.0)
    h = jnp.dot(h.astype(w3_ref.dtype), w3_ref[...],
                preferred_element_type=jnp.float32)
    o_ref[...] = (h + b3_ref[...]).astype(o_ref.dtype)


# --------------------------- layer wrappers ---------------------------------

def conv_relu_pool(a, w_pad, b_pad, cout, k=5):
    """Fused conv(kxk, stride 1, valid) + bias + ReLU + 2x2 maxpool.

    a:     (Cin, B, H, W) channel-major activation (cast to bf16 here).
    w_pad: (Cout_pad, K_pad) bf16, K ordered (cin, kh, kw), zero padded.
    b_pad: (Cout_pad, 1) f32.
    Returns (cout, B, Ho//2, Wo//2) bf16, channel-major.
    """
    a = a.astype(jnp.bfloat16)             # cast once, BEFORE any slicing
    cin, bsz, h, w = a.shape
    ho, wo = h - k + 1, w - k + 1
    ho2, wo2 = ho // 2, wo // 2
    cout_pad, k_pad = w_pad.shape
    kk = cin * k * k
    m = bsz * ho2 * wo2
    m_pad, tile_m = _pad_and_tile(m, 128, CONV_TILE_M)

    # Transposed, pool-phase-major im2col built from 25 unit-stride bf16
    # slices + 1 stack + 1 transpose (the remaining XLA-side cost):
    #   p4[ph*2+pw, ci*k*k + dh*k + dw, (b*Ho2+oh2)*Wo2 + ow2]
    #     = a[ci, b, 2*oh2 + ph + dh, 2*ow2 + pw + dw]
    slabs = [a[:, :, dh:dh + 2 * ho2, dw:dw + 2 * wo2]
             for dh in range(k) for dw in range(k)]        # (Cin,B,2Ho2,2Wo2)
    p = jnp.stack(slabs, axis=1)                           # (Cin,k*k,B,2Ho2,2Wo2)
    p = p.reshape(cin, k * k, bsz, ho2, 2, wo2, 2)
    p = p.transpose(4, 6, 0, 1, 2, 3, 5)                   # (2,2,Cin,k*k,B,Ho2,Wo2)
    p4 = p.reshape(4, kk, m)
    # M padding is kept (<= one tile of zeros) -- it buys lane-aligned tiles
    # and a >=2-step parallel grid; masked last-tile handling isn't worth it
    # at these sizes.
    p4 = jnp.pad(p4, ((0, 0), (0, k_pad - kk), (0, m_pad - m)))

    out = pl.pallas_call(
        _conv_relu_pool_kernel,
        out_shape=jax.ShapeDtypeStruct((cout_pad, m_pad), jnp.bfloat16),
        grid=(m_pad // tile_m,),
        in_specs=[
            pl.BlockSpec((cout_pad, k_pad), lambda i: (0, 0)),
            pl.BlockSpec((cout_pad, 1), lambda i: (0, 0)),
            # If profiling shows exposed DMA at large batch, add
            # pipeline_mode=pl.Buffered(3) here (fits easily in VMEM).
            pl.BlockSpec((4, k_pad, tile_m), lambda i: (0, 0, i)),
        ],
        out_specs=pl.BlockSpec((cout_pad, tile_m), lambda i: (0, i)),
        compiler_params=pltpu.CompilerParams(
            dimension_semantics=("parallel",),
            vmem_limit_bytes=VMEM_LIMIT_BYTES),
    )(w_pad, b_pad, p4)

    return out[:cout, :m].reshape(cout, bsz, ho2, wo2)


def mlp_head(x, p):
    """fc1 -> ReLU -> fc2 -> ReLU -> fc3 fused into one pallas_call.
    x: (B, 400). Returns (B, 10) f32."""
    bsz, kin = x.shape
    k_pad = p["fc1_w"].shape[0]                   # 512: fc1 contraction padded
    b_pad, tile_b = _pad_and_tile(bsz, 8, FC_TILE_M)
    x = jnp.pad(x.astype(jnp.bfloat16),
                ((0, b_pad - bsz), (0, k_pad - kin)))

    out = pl.pallas_call(
        _mlp_kernel,
        out_shape=jax.ShapeDtypeStruct((b_pad, 128), jnp.float32),
        grid=(b_pad // tile_b,),
        in_specs=[
            pl.BlockSpec((tile_b, k_pad), lambda i: (i, 0)),
            pl.BlockSpec((k_pad, 128), lambda i: (0, 0)),
            pl.BlockSpec((1, 128), lambda i: (0, 0)),
            pl.BlockSpec((128, 128), lambda i: (0, 0)),
            pl.BlockSpec((1, 128), lambda i: (0, 0)),
            pl.BlockSpec((128, 128), lambda i: (0, 0)),
            pl.BlockSpec((1, 128), lambda i: (0, 0)),
        ],
        out_specs=pl.BlockSpec((tile_b, 128), lambda i: (i, 0)),
        compiler_params=pltpu.CompilerParams(
            dimension_semantics=("parallel",),
            vmem_limit_bytes=VMEM_LIMIT_BYTES),
    )(x, p["fc1_w"], p["fc1_b"], p["fc2_w"], p["fc2_b"], p["fc3_w"], p["fc3_b"])

    return out[:bsz, :10]


# ----------------------------- parameters -----------------------------------

def init_params(key):
    """Returns (packed, raw). `packed` is what the Pallas forward consumes:
    weights pre-reshaped/transposed, zero-padded to tile-friendly shapes and
    cast to bf16 once at init; biases stay f32.  `raw` keeps PyTorch-layout
    f32 tensors for the pure-JAX reference."""
    ks = jax.random.split(key, 10)

    def u(k, shape, fan_in):   # PyTorch-style uniform(-1/sqrt(fan_in), +)
        bound = 1.0 / jnp.sqrt(jnp.float32(fan_in))
        return jax.random.uniform(k, shape, jnp.float32, -bound, bound)

    raw = {
        "conv1_w": u(ks[0], (6, 3, 5, 5), 75),   "conv1_b": u(ks[1], (6,), 75),
        "conv2_w": u(ks[2], (16, 6, 5, 5), 150), "conv2_b": u(ks[3], (16,), 150),
        "fc1_w": u(ks[4], (120, 400), 400),      "fc1_b": u(ks[5], (120,), 400),
        "fc2_w": u(ks[6], (84, 120), 120),       "fc2_b": u(ks[7], (84,), 120),
        "fc3_w": u(ks[8], (10, 84), 84),         "fc3_b": u(ks[9], (10,), 84),
    }

    def pack_conv(w, b):
        cout, cin, k, _ = w.shape
        kk = cin * k * k
        cout_pad, k_pad = _round_up(cout, 16), _round_up(kk, 8)
        wp = jnp.zeros((cout_pad, k_pad), jnp.float32)
        wp = wp.at[:cout, :kk].set(w.reshape(cout, kk))      # K order (ci,kh,kw)
        bp = jnp.zeros((cout_pad, 1), jnp.float32).at[:cout, 0].set(b)
        return wp.astype(jnp.bfloat16), bp

    def pack_fc(w, b, k_pad, n_pad):
        o, i = w.shape
        wp = jnp.zeros((k_pad, n_pad), jnp.float32).at[:i, :o].set(w.T)
        bp = jnp.zeros((1, n_pad), jnp.float32).at[0, :o].set(b)
        return wp.astype(jnp.bfloat16), bp

    c1w, c1b = pack_conv(raw["conv1_w"], raw["conv1_b"])
    c2w, c2b = pack_conv(raw["conv2_w"], raw["conv2_b"])
    f1w, f1b = pack_fc(raw["fc1_w"], raw["fc1_b"], 512, 128)   # K 400 -> 512
    f2w, f2b = pack_fc(raw["fc2_w"], raw["fc2_b"], 128, 128)
    f3w, f3b = pack_fc(raw["fc3_w"], raw["fc3_b"], 128, 128)
    packed = {"conv1_w": c1w, "conv1_b": c1b, "conv2_w": c2w, "conv2_b": c2b,
              "fc1_w": f1w, "fc1_b": f1b, "fc2_w": f2w, "fc2_b": f2b,
              "fc3_w": f3w, "fc3_b": f3b}
    return packed, raw


# ------------------------------ forward pass ---------------------------------

def convnet_forward(params, x):
    # x: (B, 3, 32, 32) NCHW f32 (same convention as the PyTorch module).
    bsz = x.shape[0]
    a = jnp.transpose(x, (1, 0, 2, 3)).astype(jnp.bfloat16)               # (3,B,32,32)
    a = conv_relu_pool(a, params["conv1_w"], params["conv1_b"], cout=6)   # (6,B,14,14)
    a = conv_relu_pool(a, params["conv2_w"], params["conv2_b"], cout=16)  # (16,B,5,5)
    # Flatten to torch's .view(-1, 16*5*5) ordering (ci, h, w).
    # TODO(synk): fuse conv2 + flatten + MLP into one pallas_call; needs an
    # in-kernel (Cout, B*25) -> (B, 400) lane-axis relayout that Mosaic does
    # not lower cleanly at these tiny sizes, so the (cheap) XLA transpose stays.
    feat = jnp.transpose(a, (1, 0, 2, 3)).reshape(bsz, 16 * 5 * 5)
    return mlp_head(feat, params)                                         # (B, 10) f32


def reference_forward(raw, x):
    """Pure-JAX f32 reference (same math as the PyTorch module)."""
    def conv(x, w, b):
        y = jax.lax.conv_general_dilated(
            x, w, (1, 1), "VALID", dimension_numbers=("NCHW", "OIHW", "NCHW"))
        return jax.nn.relu(y + b[None, :, None, None])

    def pool(x):
        return jax.lax.reduce_window(x, -jnp.inf, jax.lax.max,
                                     (1, 1, 2, 2), (1, 1, 2, 2), "VALID")

    x = pool(conv(x, raw["conv1_w"], raw["conv1_b"]))
    x = pool(conv(x, raw["conv2_w"], raw["conv2_b"]))
    x = x.reshape(x.shape[0], -1)
    x = jax.nn.relu(x @ raw["fc1_w"].T + raw["fc1_b"])
    x = jax.nn.relu(x @ raw["fc2_w"].T + raw["fc2_b"])
    return x @ raw["fc3_w"].T + raw["fc3_b"]


if __name__ == "__main__":
    key = jax.random.PRNGKey(0)
    pkey, xkey = jax.random.split(key)
    packed, raw = init_params(pkey)
    # Input spatial size is fixed at 3x32x32 by fc1's 16*5*5 input dim.
    x = jax.random.normal(xkey, (4, 3, 32, 32), jnp.float32)

    out = jax.jit(convnet_forward)(packed, x)
    out = jax.block_until_ready(out)
    assert out.shape == (4, 10) and out.dtype == jnp.float32

    # Correctness check vs. the pure-JAX f32 reference (the kernels use bf16
    # MXU operands with f32 accumulation, so allow bf16-level error).
    ref = jax.jit(reference_forward)(raw, x)
    err = float(jnp.max(jnp.abs(out - ref)))
    scale = float(jnp.max(jnp.abs(ref))) + 1.0
    assert err <= 0.05 * scale, f"mismatch: max abs err {err}, ref scale {scale}"

    print("KERNEL_OK")
</pallas_src>

<mosaic_0001>
module attributes {stable_mosaic.version = 11 : i64} {
  func.func @_conv_relu_pool_kernel(%arg0: i32, %arg1: memref<16x80xbf16, #tpu.memory_space<vmem>>, %arg2: memref<16x1xf32, #tpu.memory_space<vmem>>, %arg3: memref<4x80x512xbf16, #tpu.memory_space<vmem>>, %arg4: memref<16x512xbf16, #tpu.memory_space<vmem>>) attributes {dimension_semantics = [#tpu.dimension_semantics<parallel>], iteration_bounds = array<i64: 2>, scalar_prefetch = 0 : i64, scratch_operands = 0 : i64, tpu.core_type = #tpu.core_type<tc>, window_params = [{pipeline_mode = #tpu.pipeline_mode<synchronous>, transform_indices = @transform_0, window_bounds = array<i64: 16, 80>}, {pipeline_mode = #tpu.pipeline_mode<synchronous>, transform_indices = @transform_1, window_bounds = array<i64: 16, 1>}, {transform_indices = @transform_2, window_bounds = array<i64: 4, 80, 512>}, {transform_indices = @transform_3, window_bounds = array<i64: 16, 512>}]} {
    %c0 = arith.constant 0 : index
    %c0_0 = arith.constant 0 : index
    %0 = vector.load %arg1[%c0, %c0_0] : memref<16x80xbf16, #tpu.memory_space<vmem>>, vector<16x80xbf16>
    %c0_1 = arith.constant 0 : index
    %c0_2 = arith.constant 0 : index
    %c0_3 = arith.constant 0 : index
    %1 = vector.load %arg3[%c0_1, %c0_2, %c0_3] : memref<4x80x512xbf16, #tpu.memory_space<vmem>>, vector<1x80x512xbf16>
    %2 = vector.shape_cast %1 : vector<1x80x512xbf16> to vector<80x512xbf16>
    %cst = arith.constant dense<0.000000e+00> : vector<16x512xf32>
    %3 = tpu.matmul %0, %2, %cst {dimension_numbers = #tpu.dot_dimension_numbers<[1], [0], [0], [1], [0, 0, 1, 1], [], []>} : vector<16x80xbf16>, vector<80x512xbf16>, vector<16x512xf32> -> vector<16x512xf32>
    %c1 = arith.constant 1 : index
    %c0_4 = arith.constant 0 : index
    %c0_5 = arith.constant 0 : index
    %4 = vector.load %arg3[%c1, %c0_4, %c0_5] : memref<4x80x512xbf16, #tpu.memory_space<vmem>>, vector<1x80x512xbf16>
    %5 = vector.shape_cast %4 : vector<1x80x512xbf16> to vector<80x512xbf16>
    %cst_6 = arith.constant dense<0.000000e+00> : vector<16x512xf32>
    %6 = tpu.matmul %0, %5, %cst_6 {dimension_numbers = #tpu.dot_dimension_numbers<[1], [0], [0], [1], [0, 0, 1, 1], [], []>} : vector<16x80xbf16>, vector<80x512xbf16>, vector<16x512xf32> -> vector<16x512xf32>
    %7 = arith.maximumf %3, %6 : vector<16x512xf32>
    %c2 = arith.constant 2 : index
    %c0_7 = arith.constant 0 : index
    %c0_8 = arith.constant 0 : index
    %8 = vector.load %arg3[%c2, %c0_7, %c0_8] : memref<4x80x512xbf16, #tpu.memory_space<vmem>>, vector<1x80x512xbf16>
    %9 = vector.shape_cast %8 : vector<1x80x512xbf16> to vector<80x512xbf16>
    %cst_9 = arith.constant dense<0.000000e+00> : vector<16x512xf32>
    %10 = tpu.matmul %0, %9, %cst_9 {dimension_numbers = #tpu.dot_dimension_numbers<[1], [0], [0], [1], [0, 0, 1, 1], [], []>} : vector<16x80xbf16>, vector<80x512xbf16>, vector<16x512xf32> -> vector<16x512xf32>
    %11 = arith.maximumf %7, %10 : vector<16x512xf32>
    %c3 = arith.constant 3 : index
    %c0_10 = arith.constant 0 : index
    %c0_11 = arith.constant 0 : index
    %12 = vector.load %arg3[%c3, %c0_10, %c0_11] : memref<4x80x512xbf16, #tpu.memory_space<vmem>>, vector<1x80x512xbf16>
    %13 = vector.shape_cast %12 : vector<1x80x512xbf16> to vector<80x512xbf16>
    %cst_12 = arith.constant dense<0.000000e+00> : vector<16x512xf32>
    %14 = tpu.matmul %0, %13, %cst_12 {dimension_numbers = #tpu.dot_dimension_numbers<[1], [0], [0], [1], [0, 0, 1, 1], [], []>} : vector<16x80xbf16>, vector<80x512xbf16>, vector<16x512xf32> -> vector<16x512xf32>
    %15 = arith.maximumf %11, %14 : vector<16x512xf32>
    %c0_13 = arith.constant 0 : index
    %c0_14 = arith.constant 0 : index
    %16 = vector.load %arg2[%c0_13, %c0_14] : memref<16x1xf32, #tpu.memory_space<vmem>>, vector<16x1xf32>
    %17 = vector.broadcast %16 : vector<16x1xf32> to vector<16x512xf32>
    %18 = arith.addf %15, %17 : vector<16x512xf32>
    %cst_15 = arith.constant 0.000000e+00 : f32
    %19 = vector.broadcast %cst_15 : f32 to vector<16x512xf32>
    %20 = arith.maximumf %18, %19 : vector<16x512xf32>
    %21 = arith.truncf %20 : vector<16x512xf32> to vector<16x512xbf16>
    %c0_16 = arith.constant 0 : index
    %c0_17 = arith.constant 0 : index
    %22 = vector.load %arg4[%c0_16, %c0_17] : memref<16x512xbf16, #tpu.memory_space<vmem>>, vector<16x512xbf16>
    tpu.vector_store %arg4[%c0_16, %c0_17], %21 {strides = array<i32>} : memref<16x512xbf16, #tpu.memory_space<vmem>>, vector<16x512xbf16>,
    return
  }
  func.func @transform_0(%arg0: i32) -> (i32, i32) {
    %c0_i32 = arith.constant 0 : i32
    %c0_i32_0 = arith.constant 0 : i32
    %c0_i32_1 = arith.constant 0 : i32
    return %c0_i32, %c0_i32_0 : i32, i32
  }
  func.func @transform_1(%arg0: i32) -> (i32, i32) {
    %c0_i32 = arith.constant 0 : i32
    %c0_i32_0 = arith.constant 0 : i32
    %c0_i32_1 = arith.constant 0 : i32
    return %c0_i32, %c0_i32_0 : i32, i32
  }
  func.func @transform_2(%arg0: i32) -> (i32, i32, i32) {
    %c0_i32 = arith.constant 0 : i32
    %c0_i32_0 = arith.constant 0 : i32
    %c0_i32_1 = arith.constant 0 : i32
    return %c0_i32, %c0_i32_0, %arg0 : i32, i32, i32
  }
  func.func @transform_3(%arg0: i32) -> (i32, i32) {
    %c0_i32 = arith.constant 0 : i32
    %c0_i32_0 = arith.constant 0 : i32
    return %c0_i32, %arg0 : i32, i32
  }
}

module attributes {stable_mosaic.version = 11 : i64} {
  func.func @_conv_relu_pool_kernel(%arg0: i32, %arg1: memref<16x152xbf16, #tpu.memory_space<vmem>>, %arg2: memref<16x1xf32, #tpu.memory_space<vmem>>, %arg3: memref<4x152x128xbf16, #tpu.memory_space<vmem>>, %arg4: memref<16x128xbf16, #tpu.memory_space<vmem>>) attributes {dimension_semantics = [#tpu.dimension_semantics<parallel>], iteration_bounds = array<i64: 1>, scalar_prefetch = 0 : i64, scratch_operands = 0 : i64, tpu.core_type = #tpu.core_type<tc>, window_params = [{pipeline_mode = #tpu.pipeline_mode<synchronous>, transform_indices = @transform_0, window_bounds = array<i64: 16, 152>}, {pipeline_mode = #tpu.pipeline_mode<synchronous>, transform_indices = @transform_1, window_bounds = array<i64: 16, 1>}, {transform_indices = @transform_2, window_bounds = array<i64: 4, 152, 128>}, {transform_indices = @transform_3, window_bounds = array<i64: 16, 128>}]} {
    %c0 = arith.constant 0 : index
    %c0_0 = arith.constant 0 : index
    %0 = vector.load %arg1[%c0, %c0_0] : memref<16x152xbf16, #tpu.memory_space<vmem>>, vector<16x152xbf16>
    %c0_1 = arith.constant 0 : index
    %c0_2 = arith.constant 0 : index
    %c0_3 = arith.constant 0 : index
    %1 = vector.load %arg3[%c0_1, %c0_2, %c0_3] : memref<4x152x128xbf16, #tpu.memory_space<vmem>>, vector<1x152x128xbf16>
    %2 = vector.shape_cast %1 : vector<1x152x128xbf16> to vector<152x128xbf16>
    %cst = arith.constant dense<0.000000e+00> : vector<16x128xf32>
    %3 = tpu.matmul %0, %2, %cst {dimension_numbers = #tpu.dot_dimension_numbers<[1], [0], [0], [1], [0, 0, 1, 1], [], []>} : vector<16x152xbf16>, vector<152x128xbf16>, vector<16x128xf32> -> vector<16x128xf32>
    %c1 = arith.constant 1 : index
    %c0_4 = arith.constant 0 : index
    %c0_5 = arith.constant 0 : index
    %4 = vector.load %arg3[%c1, %c0_4, %c0_5] : memref<4x152x128xbf16, #tpu.memory_space<vmem>>, vector<1x152x128xbf16>
    %5 = vector.shape_cast %4 : vector<1x152x128xbf16> to vector<152x128xbf16>
    %cst_6 = arith.constant dense<0.000000e+00> : vector<16x128xf32>
    %6 = tpu.matmul %0, %5, %cst_6 {dimension_numbers = #tpu.dot_dimension_numbers<[1], [0], [0], [1], [0, 0, 1, 1], [], []>} : vector<16x152xbf16>, vector<152x128xbf16>, vector<16x128xf32> -> vector<16x128xf32>
    %7 = arith.maximumf %3, %6 : vector<16x128xf32>
    %c2 = arith.constant 2 : index
    %c0_7 = arith.constant 0 : index
    %c0_8 = arith.constant 0 : index
    %8 = vector.load %arg3[%c2, %c0_7, %c0_8] : memref<4x152x128xbf16, #tpu.memory_space<vmem>>, vector<1x152x128xbf16>
    %9 = vector.shape_cast %8 : vector<1x152x128xbf16> to vector<152x128xbf16>
    %cst_9 = arith.constant dense<0.000000e+00> : vector<16x128xf32>
    %10 = tpu.matmul %0, %9, %cst_9 {dimension_numbers = #tpu.dot_dimension_numbers<[1], [0], [0], [1], [0, 0, 1, 1], [], []>} : vector<16x152xbf16>, vector<152x128xbf16>, vector<16x128xf32> -> vector<16x128xf32>
    %11 = arith.maximumf %7, %10 : vector<16x128xf32>
    %c3 = arith.constant 3 : index
    %c0_10 = arith.constant 0 : index
    %c0_11 = arith.constant 0 : index
    %12 = vector.load %arg3[%c3, %c0_10, %c0_11] : memref<4x152x128xbf16, #tpu.memory_space<vmem>>, vector<1x152x128xbf16>
    %13 = vector.shape_cast %12 : vector<1x152x128xbf16> to vector<152x128xbf16>
    %cst_12 = arith.constant dense<0.000000e+00> : vector<16x128xf32>
    %14 = tpu.matmul %0, %13, %cst_12 {dimension_numbers = #tpu.dot_dimension_numbers<[1], [0], [0], [1], [0, 0, 1, 1], [], []>} : vector<16x152xbf16>, vector<152x128xbf16>, vector<16x128xf32> -> vector<16x128xf32>
    %15 = arith.maximumf %11, %14 : vector<16x128xf32>
    %c0_13 = arith.constant 0 : index
    %c0_14 = arith.constant 0 : index
    %16 = vector.load %arg2[%c0_13, %c0_14] : memref<16x1xf32, #tpu.memory_space<vmem>>, vector<16x1xf32>
    %17 = vector.broadcast %16 : vector<16x1xf32> to vector<16x128xf32>
    %18 = arith.addf %15, %17 : vector<16x128xf32>
    %cst_15 = arith.constant 0.000000e+00 : f32
    %19 = vector.broadcast %cst_15 : f32 to vector<16x128xf32>
    %20 = arith.maximumf %18, %19 : vector<16x128xf32>
    %21 = arith.truncf %20 : vector<16x128xf32> to vector<16x128xbf16>
    %c0_16 = arith.constant 0 : index
    %c0_17 = arith.constant 0 : index
    %22 = vector.load %arg4[%c0_16, %c0_17] : memref<16x128xbf16, #tpu.memory_space<vmem>>, vector<16x128xbf16>
    tpu.vector_store %arg4[%c0_16, %c0_17], %21 {strides = array<i32>} : memref<16x128xbf16, #tpu.memory_space<vmem>>, vector<16x128xbf16>,
    return
  }
  func.func @transform_0(%arg0: i32) -> (i32, i32) {
    %c0_i32 = arith.constant 0 : i32
    %c0_i32_0 = arith.constant 0 : i32
    %c0_i32_1 = arith.constant 0 : i32
    return %c0_i32, %c0_i32_0 : i32, i32
  }
  func.func @transform_1(%arg0: i32) -> (i32, i32) {
    %c0_i32 = arith.constant 0 : i32
    %c0_i32_0 = arith.constant 0 : i32
    %c0_i32_1 = arith.constant 0 : i32
    return %c0_i32, %c0_i32_0 : i32, i32
  }
  func.func @transform_2(%arg0: i32) -> (i32, i32, i32) {
    %c0_i32 = arith.constant 0 : i32
    %c0_i32_0 = arith.constant 0 : i32
    %c0_i32_1 = arith.constant 0 : i32
    return %c0_i32, %c0_i32_0, %arg0 : i32, i32, i32
  }
  func.func @transform_3(%arg0: i32) -> (i32, i32) {
    %c0_i32 = arith.constant 0 : i32
    %c0_i32_0 = arith.constant 0 : i32
    return %c0_i32, %arg0 : i32, i32
  }
}

module attributes {stable_mosaic.version = 11 : i64} {
  func.func @_mlp_kernel(%arg0: i32, %arg1: memref<8x512xbf16, #tpu.memory_space<vmem>>, %arg2: memref<512x128xbf16, #tpu.memory_space<vmem>>, %arg3: memref<1x128xf32, #tpu.memory_space<vmem>>, %arg4: memref<128x128xbf16, #tpu.memory_space<vmem>>, %arg5: memref<1x128xf32, #tpu.memory_space<vmem>>, %arg6: memref<128x128xbf16, #tpu.memory_space<vmem>>, %arg7: memref<1x128xf32, #tpu.memory_space<vmem>>, %arg8: memref<8x128xf32, #tpu.memory_space<vmem>>) attributes {dimension_semantics = [#tpu.dimension_semantics<parallel>], iteration_bounds = array<i64: 1>, scalar_prefetch = 0 : i64, scratch_operands = 0 : i64, tpu.core_type = #tpu.core_type<tc>, window_params = [{transform_indices = @transform_0, window_bounds = array<i64: 8, 512>}, {pipeline_mode = #tpu.pipeline_mode<synchronous>, transform_indices = @transform_1, window_bounds = array<i64: 512, 128>}, {pipeline_mode = #tpu.pipeline_mode<synchronous>, transform_indices = @transform_2, window_bounds = array<i64: 1, 128>}, {pipeline_mode = #tpu.pipeline_mode<synchronous>, transform_indices = @transform_3, window_bounds = array<i64: 128, 128>}, {pipeline_mode = #tpu.pipeline_mode<synchronous>, transform_indices = @transform_4, window_bounds = array<i64: 1, 128>}, {pipeline_mode = #tpu.pipeline_mode<synchronous>, transform_indices = @transform_5, window_bounds = array<i64: 128, 128>}, {pipeline_mode = #tpu.pipeline_mode<synchronous>, transform_indices = @transform_6, window_bounds = array<i64: 1, 128>}, {transform_indices = @transform_7, window_bounds = array<i64: 8, 128>}]} {
    %c0 = arith.constant 0 : index
    %c0_0 = arith.constant 0 : index
    %0 = vector.load %arg1[%c0, %c0_0] : memref<8x512xbf16, #tpu.memory_space<vmem>>, vector<8x512xbf16>
    %c0_1 = arith.constant 0 : index
    %c0_2 = arith.constant 0 : index
    %1 = vector.load %arg2[%c0_1, %c0_2] : memref<512x128xbf16, #tpu.memory_space<vmem>>, vector<512x128xbf16>
    %cst = arith.constant dense<0.000000e+00> : vector<8x128xf32>
    %2 = tpu.matmul %0, %1, %cst {dimension_numbers = #tpu.dot_dimension_numbers<[1], [0], [0], [1], [0, 0, 1, 1], [], []>} : vector<8x512xbf16>, vector<512x128xbf16>, vector<8x128xf32> -> vector<8x128xf32>
    %c0_3 = arith.constant 0 : index
    %c0_4 = arith.constant 0 : index
    %3 = vector.load %arg3[%c0_3, %c0_4] : memref<1x128xf32, #tpu.memory_space<vmem>>, vector<1x128xf32>
    %4 = vector.broadcast %3 : vector<1x128xf32> to vector<8x128xf32>
    %5 = arith.addf %2, %4 : vector<8x128xf32>
    %cst_5 = arith.constant 0.000000e+00 : f32
    %6 = vector.broadcast %cst_5 : f32 to vector<8x128xf32>
    %7 = arith.maximumf %5, %6 : vector<8x128xf32>
    %8 = arith.truncf %7 : vector<8x128xf32> to vector<8x128xbf16>
    %c0_6 = arith.constant 0 : index
    %c0_7 = arith.constant 0 : index
    %9 = vector.load %arg4[%c0_6, %c0_7] : memref<128x128xbf16, #tpu.memory_space<vmem>>, vector<128x128xbf16>
    %cst_8 = arith.constant dense<0.000000e+00> : vector<8x128xf32>
    %10 = tpu.matmul %8, %9, %cst_8 {dimension_numbers = #tpu.dot_dimension_numbers<[1], [0], [0], [1], [0, 0, 1, 1], [], []>} : vector<8x128xbf16>, vector<128x128xbf16>, vector<8x128xf32> -> vector<8x128xf32>
    %c0_9 = arith.constant 0 : index
    %c0_10 = arith.constant 0 : index
    %11 = vector.load %arg5[%c0_9, %c0_10] : memref<1x128xf32, #tpu.memory_space<vmem>>, vector<1x128xf32>
    %12 = vector.broadcast %11 : vector<1x128xf32> to vector<8x128xf32>
    %13 = arith.addf %10, %12 : vector<8x128xf32>
    %cst_11 = arith.constant 0.000000e+00 : f32
    %14 = vector.broadcast %cst_11 : f32 to vector<8x128xf32>
    %15 = arith.maximumf %13, %14 : vector<8x128xf32>
    %16 = arith.truncf %15 : vector<8x128xf32> to vector<8x128xbf16>
    %c0_12 = arith.constant 0 : index
    %c0_13 = arith.constant 0 : index
    %17 = vector.load %arg6[%c0_12, %c0_13] : memref<128x128xbf16, #tpu.memory_space<vmem>>, vector<128x128xbf16>
    %cst_14 = arith.constant dense<0.000000e+00> : vector<8x128xf32>
    %18 = tpu.matmul %16, %17, %cst_14 {dimension_numbers = #tpu.dot_dimension_numbers<[1], [0], [0], [1], [0, 0, 1, 1], [], []>} : vector<8x128xbf16>, vector<128x128xbf16>, vector<8x128xf32> -> vector<8x128xf32>
    %c0_15 = arith.constant 0 : index
    %c0_16 = arith.constant 0 : index
    %19 = vector.load %arg7[%c0_15, %c0_16] : memref<1x128xf32, #tpu.memory_space<vmem>>, vector<1x128xf32>
    %20 = vector.broadcast %19 : vector<1x128xf32> to vector<8x128xf32>
    %21 = arith.addf %18, %20 : vector<8x128xf32>
    %c0_17 = arith.constant 0 : index
    %c0_18 = arith.constant 0 : index
    %22 = vector.load %arg8[%c0_17, %c0_18] : memref<8x128xf32, #tpu.memory_space<vmem>>, vector<8x128xf32>
    tpu.vector_store %arg8[%c0_17, %c0_18], %21 {strides = array<i32>} : memref<8x128xf32, #tpu.memory_space<vmem>>, vector<8x128xf32>,
    return
  }
  func.func @transform_0(%arg0: i32) -> (i32, i32) {
    %c0_i32 = arith.constant 0 : i32
    %c0_i32_0 = arith.constant 0 : i32
    return %arg0, %c0_i32 : i32, i32
  }
  func.func @transform_1(%arg0: i32) -> (i32, i32) {
    %c0_i32 = arith.constant 0 : i32
    %c0_i32_0 = arith.constant 0 : i32
    %c0_i32_1 = arith.constant 0 : i32
    return %c0_i32, %c0_i32_0 : i32, i32
  }
  func.func @transform_2(%arg0: i32) -> (i32, i32) {
    %c0_i32 = arith.constant 0 : i32
    %c0_i32_0 = arith.constant 0 : i32
    %c0_i32_1 = arith.constant 0 : i32
    return %c0_i32, %c0_i32_0 : i32, i32
  }
  func.func @transform_3(%arg0: i32) -> (i32, i32) {
    %c0_i32 = arith.constant 0 : i32
    %c0_i32_0 = arith.constant 0 : i32
    %c0_i32_1 = arith.constant 0 : i32
    return %c0_i32, %c0_i32_0 : i32, i32
  }
  func.func @transform_4(%arg0: i32) -> (i32, i32) {
    %c0_i32 = arith.constant 0 : i32
    %c0_i32_0 = arith.constant 0 : i32
    %c0_i32_1 = arith.constant 0 : i32
    return %c0_i32, %c0_i32_0 : i32, i32
  }
  func.func @transform_5(%arg0: i32) -> (i32, i32) {
    %c0_i32 = arith.constant 0 : i32
    %c0_i32_0 = arith.constant 0 : i32
    %c0_i32_1 = arith.constant 0 : i32
    return %c0_i32, %c0_i32_0 : i32, i32
  }
  func.func @transform_6(%arg0: i32) -> (i32, i32) {
    %c0_i32 = arith.constant 0 : i32
    %c0_i32_0 = arith.constant 0 : i32
    %c0_i32_1 = arith.constant 0 : i32
    return %c0_i32, %c0_i32_0 : i32, i32
  }
  func.func @transform_7(%arg0: i32) -> (i32, i32) {
    %c0_i32 = arith.constant 0 : i32
    %c0_i32_0 = arith.constant 0 : i32
    return %arg0, %c0_i32 : i32, i32
  }
}

</mosaic_0001>

<llo_original>
// kernel: convnet_forward.3
$region0: #{convnet_forward.3}
  #allocation0 [shape = 'u32[]', space=smem, size = 0x4, offset = 0x4, fixed_abs, tag = 'smem constant byte address 0x4 - core index']
  #allocation1 [shape = 'u32[144,128]{1,0:T(1,128)}', space=vmem, size = 0x12000, scoped, tag = 'internal scratch']
  %s0 = inlined_call_operand.vmem [shape: bf16[16,80], index: 0, kind: input, shape index: {}]
  %s1 = inlined_call_operand.vmem [shape: f32[16,1], index: 1, kind: input, shape index: {}]
  %s2 = inlined_call_operand.vmem [shape: bf16[4,80,1024], index: 2, kind: input, shape index: {}]
  %s3 = inlined_call_operand.vmem [shape: bf16[16,1024], index: 3, kind: output, shape index: {}]
  %s4 = sld [smem:[#allocation0]]
  $region87: #{convnet_forward.3} parent=0
    _
  %s6 = ssub.s32 1, %s4
  %s7 = scalar_select 0, %s6, %s4
  $region1: #{convnet_forward.3} parent=0
    #allocation2 [shape = 'u8[655360]{0}', space=vmem, size = 0xa0000, scoped, tag = 'input window, operand 2']
    #allocation3 [shape = 'u8[32768]{0}', space=vmem, size = 0x8000, scoped, tag = 'output window, operand 0']
    loop: start=0, step=1, limit=4
    $region2: #{convnet_forward.3} parent=1 // loop_pre_header
      _
    $region3: #{convnet_forward.3} parent=1 // loop_header
      %s9 = sphi 0, %s13
      %p10 = scmp.ge.s32.totalorder %s9, 4
      %s17 = sphi 0, %s17
      %s19 = sphi 0, %s17
      %s20 = sphi 0, %s19
      %s34 = sphi 0, %s20
      %s38 = sphi 0, %s38
      %s40 = sphi 0, %s38
      %s41 = sphi 0, %s40
      %s55 = sphi 0, %s41
      %s61 = sphi 0, %s63
      %s64 = sphi 0, %s61
      %s65 = sphi 0, %s64
      %s81 = sphi 0, %s65
      %s87 = sphi 0, %s89
      %s90 = sphi 0, %s87
      %s91 = sphi 0, %s90
      %s107 = sphi 0, %s91
    $region4: #{convnet_forward.3} parent=1 // loop_header_branch
      %12 = sbr.rel (%p10) target = $region8
    $region5: #{convnet_forward.3} parent=1 // loop_body
      %s14 = ssub.s32 %s9, 1
      %s15 = ssub.s32 %s9, 2
      %s16 = sadd.s32 %s9, 1
      %s18 = sadd.s32 %s17, 1
      %p21 = scmp.eq.s32.totalorder %s9, 1
      %p22 = scmp.ne.s32.totalorder %s17, %s19
      %p23 = scmp.eq.s32.totalorder %s9, 0
      %p24 = por %p22, %p23
      %p25 = scmp.ne.s32.totalorder %s17, %s19
      %p26 = scmp.eq.s32.totalorder %s14, 1
      %p27 = por %p25, %p26
      %p28 = scmp.ne.s32.totalorder %s19, %s20
      %p29 = scmp.eq.s32.totalorder %s14, 0
      %p30 = por %p28, %p29
      %p31 = scmp.ne.s32.totalorder %s19, %s20
      %p32 = scmp.eq.s32.totalorder %s15, 1
      %p33 = por %p31, %p32
      %p35 = scmp.ne.s32.totalorder %s20, %s34
      %p36 = scmp.eq.s32.totalorder %s15, 0
      %p37 = por %p35, %p36
      %s39 = sadd.s32 %s38, 1
      %p42 = scmp.eq.s32.totalorder %s9, 1
      %p43 = scmp.ne.s32.totalorder %s38, %s40
      %p44 = scmp.eq.s32.totalorder %s9, 0
      %p45 = por %p43, %p44
      %p46 = scmp.ne.s32.totalorder %s38, %s40
      %p47 = scmp.eq.s32.totalorder %s14, 1
      %p48 = por %p46, %p47
      %p49 = scmp.ne.s32.totalorder %s40, %s41
      %p50 = scmp.eq.s32.totalorder %s14, 0
      %p51 = por %p49, %p50
      %p52 = scmp.ne.s32.totalorder %s40, %s41
      %p53 = scmp.eq.s32.totalorder %s15, 1
      %p54 = por %p52, %p53
      %p56 = scmp.ne.s32.totalorder %s41, %s55
      %p57 = scmp.eq.s32.totalorder %s15, 0
      %p58 = por %p56, %p57
      %s59 = ssub.s32 %s9, %s16
      %p60 = scmp.eq.s32.totalorder %s59, 0
      %s62 = sadd.s32 %s61, 1
      %s63 = scalar_select %p60, %s61, %s62
      %p66 = pneg %p60
      %p67 = scmp.eq.s32.totalorder %s9, 1
      %p68 = por %p66, %p67
      %p69 = scmp.ne.s32.totalorder %s61, %s64
      %p70 = scmp.eq.s32.totalorder %s9, 0
      %p71 = por %p69, %p70
      %p72 = scmp.ne.s32.totalorder %s61, %s64
      %p73 = scmp.eq.s32.totalorder %s14, 1
      %p74 = por %p72, %p73
      %p75 = scmp.ne.s32.totalorder %s64, %s65
      %p76 = scmp.eq.s32.totalorder %s14, 0
      %p77 = por %p75, %p76
      %p78 = scmp.ne.s32.totalorder %s64, %s65
      %p79 = scmp.eq.s32.totalorder %s15, 1
      %p80 = por %p78, %p79
      %p82 = scmp.ne.s32.totalorder %s65, %s81
      %p83 = scmp.eq.s32.totalorder %s15, 0
      %p84 = por %p82, %p83
      %s85 = ssub.s32 %s9, %s16
      %p86 = scmp.eq.s32.totalorder %s85, 0
      %s88 = sadd.s32 %s87, 1
      %s89 = scalar_select %p86, %s87, %s88
      %p92 = pneg %p86
      %p93 = scmp.eq.s32.totalorder %s9, 1
      %p94 = por %p92, %p93
      %p95 = scmp.ne.s32.totalorder %s87, %s90
      %p96 = scmp.eq.s32.totalorder %s9, 0
      %p97 = por %p95, %p96
      %p98 = scmp.ne.s32.totalorder %s87, %s90
      %p99 = scmp.eq.s32.totalorder %s14, 1
      %p100 = por %p98, %p99
      %p101 = scmp.ne.s32.totalorder %s90, %s91
      %p102 = scmp.eq.s32.totalorder %s14, 0
      %p103 = por %p101, %p102
      %p104 = scmp.ne.s32.totalorder %s90, %s91
      %p105 = scmp.eq.s32.totalorder %s15, 1
      %p106 = por %p104, %p105
      %p108 = scmp.ne.s32.totalorder %s91, %s107
      %p109 = scmp.eq.s32.totalorder %s15, 0
      %p110 = por %p108, %p109
      %p111 = scmp.le.s32.totalorder 1, %s9
      %p112 = scmp.lt.s32.totalorder %s9, 3
      %p113 = pnand %p111, %p112
      %p114 = pneg %p113
      // Predicated region
      $region9: #{convnet_forward.3} parent=5 // pred_check
        _
      $region10: #{convnet_forward.3} parent=5 // pred_check_branch
        %116 = sbr.rel (%p113) target = $region12
      $region11: #{convnet_forward.3} parent=5 // pred_region
        %s117 = ssub.s32 %s9, 1
        // Predicated region
        $region13: #{convnet_forward.3} parent=11 // pred_check
          %p118 = pneg %p30
        $region14: #{convnet_forward.3} parent=11 // pred_check_branch
          %120 = sbr.rel (%p118) target = $region16
        $region15: #{convnet_forward.3} parent=11 // pred_region
          _
        $region16: #{convnet_forward.3} parent=11 // pred_fallthru
          _
        // Predicated region
        $region17: #{convnet_forward.3} parent=11 // pred_check
          %p121 = pneg %p51
        $region18: #{convnet_forward.3} parent=11 // pred_check_branch
          %123 = sbr.rel (%p121) target = $region20
        $region19: #{convnet_forward.3} parent=11 // pred_region
          _
        $region20: #{convnet_forward.3} parent=11 // pred_fallthru
          _
      $region12: #{convnet_forward.3} parent=5 // pred_fallthru
        _
      %p124 = scmp.lt.s32.totalorder %s9, 2
      // Predicated region
      $region21: #{convnet_forward.3} parent=5 // pred_check
        %p125 = pneg %p124
      $region22: #{convnet_forward.3} parent=5 // pred_check_branch
        %127 = sbr.rel (%p125) target = $region24
      $region23: #{convnet_forward.3} parent=5 // pred_region
        // Predicated region
        $region25: #{convnet_forward.3} parent=23 // pred_check
          %p128 = pneg %p71
        $region26: #{convnet_forward.3} parent=23 // pred_check_branch
          %130 = sbr.rel (%p128) target = $region28
        $region27: #{convnet_forward.3} parent=23 // pred_region
          %s131 = sand.u32 %s61, 1
          %s132 = sand.u32 %s61, 1
          %s133 = smul.addr %s132, 640
          %s134 = scalar_lea.vmem [#allocation2], %s133
          %s135 = smul.u32 4, %s9
          %s136 = smul.addr %s135, 4
          %s137 = scalar_lea.vmem %s2, %s136
          // Predicated region
          $region29: #{convnet_forward.3} parent=27 // pred_check
            _
          $region30: #{convnet_forward.3} parent=27 // pred_check_branch
            %139 = sbr.rel (0) target = $region32
          $region31: #{convnet_forward.3} parent=27 // pred_region
            // Predicated region
            $region33: #{convnet_forward.3} parent=31 // pred_check
              _
            $region34: #{convnet_forward.3} parent=31 // pred_check_branch
              %141 = sbr.rel (0) target = $region36
            $region35: #{convnet_forward.3} parent=31 // pred_region
              loop: start=0, step=1, limit=1
              $region37: #{convnet_forward.3} parent=35 // loop_pre_header
                _
              $region38: #{convnet_forward.3} parent=35 // loop_header
                %s143 = sphi 0, %s147
                %p144 = scmp.ge.s32.totalorder %s143, 1
                %s148 = sphi %s137, %s137
                %s149 = sphi %s134, %s134
              $region39: #{convnet_forward.3} parent=35 // loop_header_branch
                %146 = sbr.rel (%p144) target = $region43
              $region40: #{convnet_forward.3} parent=35 // loop_body
                %v150 = vld [vmem:[%s148] sm:$0xff]
                %151 = vst [vmem:[%s149] sm:$0xff] %v150
                %v152 = vld [vmem:[%s148 + $0x8] sm:$0xff]
                %153 = vst [vmem:[%s149 + $0x8] sm:$0xff] %v152
                %v154 = vld [vmem:[%s148 + $0x20] sm:$0xff]
                %155 = vst [vmem:[%s149 + $0x10] sm:$0xff] %v154
                %v156 = vld [vmem:[%s148 + $0x28] sm:$0xff]
                %157 = vst [vmem:[%s149 + $0x18] sm:$0xff] %v156
                %v158 = vld [vmem:[%s148 + $0x40] sm:$0xff]
                %159 = vst [vmem:[%s149 + $0x20] sm:$0xff] %v158
                %v160 = vld [vmem:[%s148 + $0x48] sm:$0xff]
                %161 = vst [vmem:[%s149 + $0x28] sm:$0xff] %v160
                %v162 = vld [vmem:[%s148 + $0x60] sm:$0xff]
                %163 = vst [vmem:[%s149 + $0x30] sm:$0xff] %v162
                %v164 = vld [vmem:[%s148 + $0x68] sm:$0xff]
                %165 = vst [vmem:[%s149 + $0x38] sm:$0xff] %v164
                %v166 = vld [vmem:[%s148 + $0x80] sm:$0xff]
                %167 = vst [vmem:[%s149 + $0x40] sm:$0xff] %v166
                %v168 = vld [vmem:[%s148 + $0x88] sm:$0xff]
                %169 = vst [vmem:[%s149 + $0x48] sm:$0xff] %v168
                %v170 = vld [vmem:[%s148 + $0xa0] sm:$0xff]
                %171 = vst [vmem:[%s149 + $0x50] sm:$0xff] %v170
                %v172 = vld [vmem:[%s148 + $0xa8] sm:$0xff]
                %173 = vst [vmem:[%s149 + $0x58] sm:$0xff] %v172
                %v174 = vld [vmem:[%s148 + $0xc0] sm:$0xff]
                %175 = vst [vmem:[%s149 + $0x60] sm:$0xff] %v174
                %v176 = vld [vmem:[%s148 + $0xc8] sm:$0xff]
                %177 = vst [vmem:[%s149 + $0x68] sm:$0xff] %v176
                %v178 = vld [vmem:[%s148 + $0xe0] sm:$0xff]
                %179 = vst [vmem:[%s149 + $0x70] sm:$0xff] %v178
                %v180 = vld [vmem:[%s148 + $0xe8] sm:$0xff]
                %181 = vst [vmem:[%s149 + $0x78] sm:$0xff] %v180
                %v182 = vld [vmem:[%s148 + $0x100] sm:$0xff]
                %183 = vst [vmem:[%s149 + $0x80] sm:$0xff] %v182
                %v184 = vld [vmem:[%s148 + $0x108] sm:$0xff]
                %185 = vst [vmem:[%s149 + $0x88] sm:$0xff] %v184
                %v186 = vld [vmem:[%s148 + $0x120] sm:$0xff]
                %187 = vst [vmem:[%s149 + $0x90] sm:$0xff] %v186
                %v188 = vld [vmem:[%s148 + $0x128] sm:$0xff]
                %189 = vst [vmem:[%s149 + $0x98] sm:$0xff] %v188
                %v190 = vld [vmem:[%s148 + $0x140] sm:$0xff]
                %191 = vst [vmem:[%s149 + $0xa0] sm:$0xff] %v190
                %v192 = vld [vmem:[%s148 + $0x148] sm:$0xff]
                %193 = vst [vmem:[%s149 + $0xa8] sm:$0xff] %v192
                %v194 = vld [vmem:[%s148 + $0x160] sm:$0xff]
                %195 = vst [vmem:[%s149 + $0xb0] sm:$0xff] %v194
                %v196 = vld [vmem:[%s148 + $0x168] sm:$0xff]
                %197 = vst [vmem:[%s149 + $0xb8] sm:$0xff] %v196
                %v198 = vld [vmem:[%s148 + $0x180] sm:$0xff]
                %199 = vst [vmem:[%s149 + $0xc0] sm:$0xff] %v198
                %v200 = vld [vmem:[%s148 + $0x188] sm:$0xff]
                %201 = vst [vmem:[%s149 + $0xc8] sm:$0xff] %v200
                %v202 = vld [vmem:[%s148 + $0x1a0] sm:$0xff]
                %203 = vst [vmem:[%s149 + $0xd0] sm:$0xff] %v202
                %v204 = vld [vmem:[%s148 + $0x1a8] sm:$0xff]
                %205 = vst [vmem:[%s149 + $0xd8] sm:$0xff] %v204
                %v206 = vld [vmem:[%s148 + $0x1c0] sm:$0xff]
                %207 = vst [vmem:[%s149 + $0xe0] sm:$0xff] %v206
                %v208 = vld [vmem:[%s148 + $0x1c8] sm:$0xff]
                %209 = vst [vmem:[%s149 + $0xe8] sm:$0xff] %v208
                %v210 = vld [vmem:[%s148 + $0x1e0] sm:$0xff]
                %211 = vst [vmem:[%s149 + $0xf0] sm:$0xff] %v210
                %v212 = vld [vmem:[%s148 + $0x1e8] sm:$0xff]
                %213 = vst [vmem:[%s149 + $0xf8] sm:$0xff] %v212
                %v214 = vld [vmem:[%s148 + $0x200] sm:$0xff]
                %215 = vst [vmem:[%s149 + $0x100] sm:$0xff] %v214
                %v216 = vld [vmem:[%s148 + $0x208] sm:$0xff]
                %217 = vst [vmem:[%s149 + $0x108] sm:$0xff] %v216
                %v218 = vld [vmem:[%s148 + $0x220] sm:$0xff]
                %219 = vst [vmem:[%s149 + $0x110] sm:$0xff] %v218
                %v220 = vld [vmem:[%s148 + $0x228] sm:$0xff]
                %221 = vst [vmem:[%s149 + $0x118] sm:$0xff] %v220
                %v222 = vld [vmem:[%s148 + $0x240] sm:$0xff]
                %223 = vst [vmem:[%s149 + $0x120] sm:$0xff] %v222
                %v224 = vld [vmem:[%s148 + $0x248] sm:$0xff]
                %225 = vst [vmem:[%s149 + $0x128] sm:$0xff] %v224
                %v226 = vld [vmem:[%s148 + $0x260] sm:$0xff]
                %227 = vst [vmem:[%s149 + $0x130] sm:$0xff] %v226
                %v228 = vld [vmem:[%s148 + $0x268] sm:$0xff]
                %229 = vst [vmem:[%s149 + $0x138] sm:$0xff] %v228
                %v230 = vld [vmem:[%s148 + $0x280] sm:$0xff]
                %231 = vst [vmem:[%s149 + $0x140] sm:$0xff] %v230
                %v232 = vld [vmem:[%s148 + $0x288] sm:$0xff]
                %233 = vst [vmem:[%s149 + $0x148] sm:$0xff] %v232
                %v234 = vld [vmem:[%s148 + $0x2a0] sm:$0xff]
                %235 = vst [vmem:[%s149 + $0x150] sm:$0xff] %v234
                %v236 = vld [vmem:[%s148 + $0x2a8] sm:$0xff]
                %237 = vst [vmem:[%s149 + $0x158] sm:$0xff] %v236
                %v238 = vld [vmem:[%s148 + $0x2c0] sm:$0xff]
                %239 = vst [vmem:[%s149 + $0x160] sm:$0xff] %v238
                %v240 = vld [vmem:[%s148 + $0x2c8] sm:$0xff]
                %241 = vst [vmem:[%s149 + $0x168] sm:$0xff] %v240
                %v242 = vld [vmem:[%s148 + $0x2e0] sm:$0xff]
                %243 = vst [vmem:[%s149 + $0x170] sm:$0xff] %v242
                %v244 = vld [vmem:[%s148 + $0x2e8] sm:$0xff]
                %245 = vst [vmem:[%s149 + $0x178] sm:$0xff] %v244
                %v246 = vld [vmem:[%s148 + $0x300] sm:$0xff]
                %247 = vst [vmem:[%s149 + $0x180] sm:$0xff] %v246
                %v248 = vld [vmem:[%s148 + $0x308] sm:$0xff]
                %249 = vst [vmem:[%s149 + $0x188] sm:$0xff] %v248
                %v250 = vld [vmem:[%s148 + $0x320] sm:$0xff]
                %251 = vst [vmem:[%s149 + $0x190] sm:$0xff] %v250
                %v252 = vld [vmem:[%s148 + $0x328] sm:$0xff]
                %253 = vst [vmem:[%s149 + $0x198] sm:$0xff] %v252
                %v254 = vld [vmem:[%s148 + $0x340] sm:$0xff]
                %255 = vst [vmem:[%s149 + $0x1a0] sm:$0xff] %v254
                %v256 = vld [vmem:[%s148 + $0x348] sm:$0xff]
                %257 = vst [vmem:[%s149 + $0x1a8] sm:$0xff] %v256
                %v258 = vld [vmem:[%s148 + $0x360] sm:$0xff]
                %259 = vst [vmem:[%s149 + $0x1b0] sm:$0xff] %v258
                %v260 = vld [vmem:[%s148 + $0x368] sm:$0xff]
                %261 = vst [vmem:[%s149 + $0x1b8] sm:$0xff] %v260
                %v262 = vld [vmem:[%s148 + $0x380] sm:$0xff]
                %263 = vst [vmem:[%s149 + $0x1c0] sm:$0xff] %v262
                %v264 = vld [vmem:[%s148 + $0x388] sm:$0xff]
                %265 = vst [vmem:[%s149 + $0x1c8] sm:$0xff] %v264
                %v266 = vld [vmem:[%s148 + $0x3a0] sm:$0xff]
                %267 = vst [vmem:[%s149 + $0x1d0] sm:$0xff] %v266
                %v268 = vld [vmem:[%s148 + $0x3a8] sm:$0xff]
                %269 = vst [vmem:[%s149 + $0x1d8] sm:$0xff] %v268
                %v270 = vld [vmem:[%s148 + $0x3c0] sm:$0xff]
                %271 = vst [vmem:[%s149 + $0x1e0] sm:$0xff] %v270
                %v272 = vld [vmem:[%s148 + $0x3c8] sm:$0xff]
                %273 = vst [vmem:[%s149 + $0x1e8] sm:$0xff] %v272
                %v274 = vld [vmem:[%s148 + $0x3e0] sm:$0xff]
                %275 = vst [vmem:[%s149 + $0x1f0] sm:$0xff] %v274
                %v276 = vld [vmem:[%s148 + $0x3e8] sm:$0xff]
                %277 = vst [vmem:[%s149 + $0x1f8] sm:$0xff] %v276
                %v278 = vld [vmem:[%s148 + $0x400] sm:$0xff]
                %279 = vst [vmem:[%s149 + $0x200] sm:$0xff] %v278
                %v280 = vld [vmem:[%s148 + $0x408] sm:$0xff]
                %281 = vst [vmem:[%s149 + $0x208] sm:$0xff] %v280
                %v282 = vld [vmem:[%s148 + $0x420] sm:$0xff]
                %283 = vst [vmem:[%s149 + $0x210] sm:$0xff] %v282
                %v284 = vld [vmem:[%s148 + $0x428] sm:$0xff]
                %285 = vst [vmem:[%s149 + $0x218] sm:$0xff] %v284
                %v286 = vld [vmem:[%s148 + $0x440] sm:$0xff]
                %287 = vst [vmem:[%s149 + $0x220] sm:$0xff] %v286
                %v288 = vld [vmem:[%s148 + $0x448] sm:$0xff]
                %289 = vst [vmem:[%s149 + $0x228] sm:$0xff] %v288
                %v290 = vld [vmem:[%s148 + $0x460] sm:$0xff]
                %291 = vst [vmem:[%s149 + $0x230] sm:$0xff] %v290
                %v292 = vld [vmem:[%s148 + $0x468] sm:$0xff]
                %293 = vst [vmem:[%s149 + $0x238] sm:$0xff] %v292
                %v294 = vld [vmem:[%s148 + $0x480] sm:$0xff]
                %295 = vst [vmem:[%s149 + $0x240] sm:$0xff] %v294
                %v296 = vld [vmem:[%s148 + $0x488] sm:$0xff]
                %297 = vst [vmem:[%s149 + $0x248] sm:$0xff] %v296
                %v298 = vld [vmem:[%s148 + $0x4a0] sm:$0xff]
                %299 = vst [vmem:[%s149 + $0x250] sm:$0xff] %v298
                %v300 = vld [vmem:[%s148 + $0x4a8] sm:$0xff]
                %301 = vst [vmem:[%s149 + $0x258] sm:$0xff] %v300
                %v302 = vld [vmem:[%s148 + $0x4c0] sm:$0xff]
                %303 = vst [vmem:[%s149 + $0x260] sm:$0xff] %v302
                %v304 = vld [vmem:[%s148 + $0x4c8] sm:$0xff]
                %305 = vst [vmem:[%s149 + $0x268] sm:$0xff] %v304
                %v306 = vld [vmem:[%s148 + $0x4e0] sm:$0xff]
                %307 = vst [vmem:[%s149 + $0x270] sm:$0xff] %v306
                %v308 = vld [vmem:[%s148 + $0x4e8] sm:$0xff]
                %309 = vst [vmem:[%s149 + $0x278] sm:$0xff] %v308
              $region41: #{convnet_forward.3} parent=35 // loop_footer
                %s147 = sadd.s32 1, %s143
              $region42: #{convnet_forward.3} parent=35 // loop_footer_branch
                %142 = sbr.rel target = $region38
              $region43: #{convnet_forward.3} parent=35 // loop_exit
                _
            $region36: #{convnet_forward.3} parent=31 // pred_fallthru
              _
            // Predicated region
            $region44: #{convnet_forward.3} parent=31 // pred_check
              _
            $region45: #{convnet_forward.3} parent=31 // pred_check_branch
              %311 = sbr.rel target = $region47
            $region46: #{convnet_forward.3} parent=31 // pred_region
              _
            $region47: #{convnet_forward.3} parent=31 // pred_fallthru
              _
          $region32: #{convnet_forward.3} parent=27 // pred_fallthru
            _
          %312 = vnop
        $region28: #{convnet_forward.3} parent=23 // pred_fallthru
          _
      $region24: #{convnet_forward.3} parent=5 // pred_fallthru
        _
      %p313 = scmp.le.s32.totalorder 1, %s9
      %p314 = scmp.lt.s32.totalorder %s9, 3
      %p315 = pnand %p313, %p314
      %p316 = pneg %p315
      // Predicated region
      $region48: #{convnet_forward.3} parent=5 // pred_check
        _
      $region49: #{convnet_forward.3} parent=5 // pred_check_branch
        %318 = sbr.rel (%p315) target = $region51
      $region50: #{convnet_forward.3} parent=5 // pred_region
        %s319 = ssub.s32 %s9, 1
        %s320 = sand.u32 %s64, 1
        %s321 = sand.u32 %s64, 1
        %s322 = smul.addr %s321, 640
        %s323 = scalar_lea.vmem [#allocation2], %s322
        // Predicated region
        $region52: #{convnet_forward.3} parent=50 // pred_check
          %p324 = pneg %p77
        $region53: #{convnet_forward.3} parent=50 // pred_check_branch
          %326 = sbr.rel (%p324) target = $region55
        $region54: #{convnet_forward.3} parent=50 // pred_region
          _
        $region55: #{convnet_forward.3} parent=50 // pred_fallthru
          _
        %p327 = pneg %p30
        %p328 = pneg %p27
        %p329 = pneg %p51
        %p330 = pneg %p48
        %s331 = sand.u32 %s64, 1
        %s332 = sand.u32 %s64, 1
        %s333 = smul.addr %s332, 640
        %s334 = scalar_lea.vmem [#allocation2], %s333
        %p335 = pneg %p77
        %p336 = pneg %p74
        %p337 = pneg %p103
        %p338 = pneg %p100
        %s339 = sand.u32 %s90, 1
        %s340 = sand.u32 %s90, 1
        %s341 = smul.addr %s340, 32
        %s342 = scalar_lea.vmem [#allocation3], %s341
        %s343 = smul.u32 4, %s14
        %s344 = smul.u32 4, %s14
        %v346 = vld [vmem:[%s0] sm:$0xf]
        %v347 = vld [vmem:[%s0 + $0x4] sm:$0xf]
        %v348 = vld [vmem:[%s323] sm:$0xff]
        %v349 = vld [vmem:[%s323 + $0x8] sm:$0xff]
        %v350 = vld [vmem:[%s323 + $0x10] sm:$0xff]
        %v351 = vld [vmem:[%s323 + $0x18] sm:$0xff]
        %v352 = vld [vmem:[%s323 + $0x20] sm:$0xff]
        %v353 = vld [vmem:[%s323 + $0x28] sm:$0xff]
        %v354 = vld [vmem:[%s323 + $0x30] sm:$0xff]
        %v355 = vld [vmem:[%s323 + $0x38] sm:$0xff]
        %v356 = vld [vmem:[%s323 + $0x40] sm:$0xff]
        %v357 = vld [vmem:[%s323 + $0x48] sm:$0xff]
        %v358 = vld [vmem:[%s323 + $0x50] sm:$0xff]
        %v359 = vld [vmem:[%s323 + $0x58] sm:$0xff]
        %v360 = vld [vmem:[%s323 + $0x60] sm:$0xff]
        %v361 = vld [vmem:[%s323 + $0x68] sm:$0xff]
        %v362 = vld [vmem:[%s323 + $0x70] sm:$0xff]
        %v363 = vld [vmem:[%s323 + $0x78] sm:$0xff]
        %v364 = vld [vmem:[%s323 + $0x80] sm:$0xff]
        %v365 = vld [vmem:[%s323 + $0x88] sm:$0xff]
        %v366 = vld [vmem:[%s323 + $0x90] sm:$0xff]
        %v367 = vld [vmem:[%s323 + $0x98] sm:$0xff]
        %v370 = vunpack.c.l.b16 %v346
        %v371 = vunpack.c.l.b16 %v347
        %v372 = vpack.c.b16 %v371, %v370
        %v393 = vunpack.c.l.b16 %v348
        %v394 = vunpack.c.h.b16 %v348
        %v395 = vunpack.c.l.b16 %v349
        %v396 = vunpack.c.h.b16 %v349
        %v397 = vunpack.c.l.b16 %v350
        %v398 = vunpack.c.h.b16 %v350
        %v399 = vunpack.c.l.b16 %v351
        %v400 = vunpack.c.h.b16 %v351
        %v401 = vunpack.c.l.b16 %v352
        %v402 = vunpack.c.h.b16 %v352
        %v403 = vunpack.c.l.b16 %v353
        %v404 = vunpack.c.h.b16 %v353
        %v405 = vunpack.c.l.b16 %v354
        %v406 = vunpack.c.h.b16 %v354
        %v407 = vunpack.c.l.b16 %v355
        %v408 = vunpack.c.h.b16 %v355
        %v409 = vunpack.c.l.b16 %v356
        %v410 = vunpack.c.h.b16 %v356
        %v411 = vunpack.c.l.b16 %v357
        %v412 = vunpack.c.h.b16 %v357
        %v413 = vunpack.c.l.b16 %v358
        %v414 = vunpack.c.h.b16 %v358
        %v415 = vunpack.c.l.b16 %v359
        %v416 = vunpack.c.h.b16 %v359
        %v417 = vunpack.c.l.b16 %v360
        %v418 = vunpack.c.h.b16 %v360
        %v419 = vunpack.c.l.b16 %v361
        %v420 = vunpack.c.h.b16 %v361
        %v421 = vunpack.c.l.b16 %v362
        %v422 = vunpack.c.h.b16 %v362
        %v423 = vunpack.c.l.b16 %v363
        %v424 = vunpack.c.h.b16 %v363
        %v425 = vunpack.c.l.b16 %v364
        %v426 = vunpack.c.h.b16 %v364
        %v427 = vunpack.c.l.b16 %v365
        %v428 = vunpack.c.h.b16 %v365
        %v429 = vunpack.c.l.b16 %v366
        %v430 = vunpack.c.h.b16 %v366
        %v431 = vunpack.c.l.b16 %v367
        %v432 = vunpack.c.h.b16 %v367
        %v433 = vpack.c.b16 %v397, %v393
        %v434 = vpack.c.b16 %v398, %v394
        %v435 = vpack.c.b16 %v399, %v395
        %v436 = vpack.c.b16 %v400, %v396
        %v437 = vpack.c.b16 %v405, %v401
        %v438 = vpack.c.b16 %v406, %v402
        %v439 = vpack.c.b16 %v407, %v403
        %v440 = vpack.c.b16 %v408, %v404
        %v441 = vpack.c.b16 %v413, %v409
        %v442 = vpack.c.b16 %v414, %v410
        %v443 = vpack.c.b16 %v415, %v411
        %v444 = vpack.c.b16 %v416, %v412
        %v445 = vpack.c.b16 %v421, %v417
        %v446 = vpack.c.b16 %v422, %v418
        %v447 = vpack.c.b16 %v423, %v419
        %v448 = vpack.c.b16 %v424, %v420
        %v449 = vpack.c.b16 %v429, %v425
        %v450 = vpack.c.b16 %v430, %v426
        %v451 = vpack.c.b16 %v431, %v427
        %v452 = vpack.c.b16 %v432, %v428
        %vm473 = vcmask 654336
        %v475 = vsel %vm473, %v372, 0
        %477 = vmatprep.subr.bf16.mxu0 %v434
        %478 = vmatpush1.bf16.msra.mxu0 %v433
        %479 = vmatprep.subr.bf16.mxu0 %v438
        %480 = vmatpush1.bf16.msra.mxu0 %v437
        %481 = vmatprep.subr.bf16.mxu0 %v442
        %482 = vmatpush1.bf16.msra.mxu0 %v441
        %483 = vmatprep.subr.bf16.mxu0 %v446
        %484 = vmatpush1.bf16.msra.mxu0 %v445
        %485 = vmatprep.subr.bf16.mxu0 %v450
        %486 = vmatpush1.bf16.msra.mxu0 %v449
        %487 = vmatprep.subr.bf16.mxu0 0
        %488 = vmatpush1.bf16.msra.mxu0 0
        %489 = vmatprep.subr.bf16.mxu0 0
        %490 = vmatpush1.bf16.msra.mxu0 0
        %491 = vmatprep.subr.bf16.mxu0 0
        %492 = vmatpush1.bf16.msra.mxu0 0
        %493 = vmatprep.subr.bf16.mxu0 0
        %494 = vmatpush1.bf16.msra.mxu0 0
        %495 = vmatprep.subr.bf16.mxu0 0
        %496 = vmatpush1.bf16.msra.mxu0 0
        %497 = vmatprep.subr.bf16.mxu0 0
        %498 = vmatpush1.bf16.msra.mxu0 0
        %499 = vmatprep.subr.bf16.mxu0 0
        %500 = vmatpush1.bf16.msra.mxu0 0
        %501 = vmatprep.subr.bf16.mxu0 0
        %502 = vmatpush1.bf16.msra.mxu0 0
        %503 = vmatprep.subr.bf16.mxu0 0
        %504 = vmatpush1.bf16.msra.mxu0 0
        %505 = vmatprep.subr.bf16.mxu0 0
        %506 = vmatpush1.bf16.msra.mxu0 0
        %507 = vmatprep.subr.bf16.mxu0 0
        %508 = vmatpush1.bf16.msra.mxu0 0
        %509 = vmatprep.mubr.bf16.mxu0 0
        %510 = vmatmul.mubr.bf16.gmra.mrb[0].mxu0 %v475
        %v511 = vpop.f32.mrb[0].mxu0
        %v512 = vadd.f32 0.0, %v511
        %v513 = vpop.f32.mrb[0].mxu0
        %v514 = vadd.f32 0.0, %v513
        %v515 = vpop.f32.mrb[0].mxu0
        %v516 = vadd.f32 0.0, %v515
        %v517 = vpop.f32.mrb[0].mxu0
        %v518 = vadd.f32 0.0, %v517
        %519 = vdwg.mxu0
        %520 = vmatprep.subr.bf16.mxu0 %v436
        %521 = vmatpush1.bf16.msra.mxu0 %v435
        %522 = vmatprep.subr.bf16.mxu0 %v440
        %523 = vmatpush1.bf16.msra.mxu0 %v439
        %524 = vmatprep.subr.bf16.mxu0 %v444
        %525 = vmatpush1.bf16.msra.mxu0 %v443
        %526 = vmatprep.subr.bf16.mxu0 %v448
        %527 = vmatpush1.bf16.msra.mxu0 %v447
        %528 = vmatprep.subr.bf16.mxu0 %v452
        %529 = vmatpush1.bf16.msra.mxu0 %v451
        %530 = vmatprep.subr.bf16.mxu0 0
        %531 = vmatpush1.bf16.msra.mxu0 0
        %532 = vmatprep.subr.bf16.mxu0 0
        %533 = vmatpush1.bf16.msra.mxu0 0
        %534 = vmatprep.subr.bf16.mxu0 0
        %535 = vmatpush1.bf16.msra.mxu0 0
        %536 = vmatprep.subr.bf16.mxu0 0
        %537 = vmatpush1.bf16.msra.mxu0 0
        %538 = vmatprep.subr.bf16.mxu0 0
        %539 = vmatpush1.bf16.msra.mxu0 0
        %540 = vmatprep.subr.bf16.mxu0 0
        %541 = vmatpush1.bf16.msra.mxu0 0
        %542 = vmatprep.subr.bf16.mxu0 0
        %543 = vmatpush1.bf16.msra.mxu0 0
        %544 = vmatprep.subr.bf16.mxu0 0
        %545 = vmatpush1.bf16.msra.mxu0 0
        %546 = vmatprep.subr.bf16.mxu0 0
        %547 = vmatpush1.bf16.msra.mxu0 0
        %548 = vmatprep.subr.bf16.mxu0 0
        %549 = vmatpush1.bf16.msra.mxu0 0
        %550 = vmatprep.subr.bf16.mxu0 0
        %551 = vmatpush1.bf16.msra.mxu0 0
        %552 = vmatprep.mubr.bf16.mxu0 0
        %553 = vmatmul.mubr.bf16.gmra.mrb[0].mxu0 %v475
        %v554 = vpop.f32.mrb[0].mxu0
        %v555 = vadd.f32 0.0, %v554
        %v556 = vpop.f32.mrb[0].mxu0
        %v557 = vadd.f32 0.0, %v556
        %v558 = vpop.f32.mrb[0].mxu0
        %v559 = vadd.f32 0.0, %v558
        %v560 = vpop.f32.mrb[0].mxu0
        %v561 = vadd.f32 0.0, %v560
        %562 = vdwg.mxu0
        %s563 = scalar_lea.vmem %s323, 160 [#allocation2]
        %v564 = vld [vmem:[%s563] sm:$0xff]
        %v565 = vld [vmem:[%s563 + $0x8] sm:$0xff]
        %v566 = vld [vmem:[%s563 + $0x10] sm:$0xff]
        %v567 = vld [vmem:[%s563 + $0x18] sm:$0xff]
        %v568 = vld [vmem:[%s563 + $0x20] sm:$0xff]
        %v569 = vld [vmem:[%s563 + $0x28] sm:$0xff]
        %v570 = vld [vmem:[%s563 + $0x30] sm:$0xff]
        %v571 = vld [vmem:[%s563 + $0x38] sm:$0xff]
        %v572 = vld [vmem:[%s563 + $0x40] sm:$0xff]
        %v573 = vld [vmem:[%s563 + $0x48] sm:$0xff]
        %v574 = vld [vmem:[%s563 + $0x50] sm:$0xff]
        %v575 = vld [vmem:[%s563 + $0x58] sm:$0xff]
        %v576 = vld [vmem:[%s563 + $0x60] sm:$0xff]
        %v577 = vld [vmem:[%s563 + $0x68] sm:$0xff]
        %v578 = vld [vmem:[%s563 + $0x70] sm:$0xff]
        %v579 = vld [vmem:[%s563 + $0x78] sm:$0xff]
        %v580 = vld [vmem:[%s563 + $0x80] sm:$0xff]
        %v581 = vld [vmem:[%s563 + $0x88] sm:$0xff]
        %v582 = vld [vmem:[%s563 + $0x90] sm:$0xff]
        %v583 = vld [vmem:[%s563 + $0x98] sm:$0xff]
        %v604 = vunpack.c.l.b16 %v564
        %v605 = vunpack.c.h.b16 %v564
        %v606 = vunpack.c.l.b16 %v565
        %v607 = vunpack.c.h.b16 %v565
        %v608 = vunpack.c.l.b16 %v566
        %v609 = vunpack.c.h.b16 %v566
        %v610 = vunpack.c.l.b16 %v567
        %v611 = vunpack.c.h.b16 %v567
        %v612 = vunpack.c.l.b16 %v568
        %v613 = vunpack.c.h.b16 %v568
        %v614 = vunpack.c.l.b16 %v569
        %v615 = vunpack.c.h.b16 %v569
        %v616 = vunpack.c.l.b16 %v570
        %v617 = vunpack.c.h.b16 %v570
        %v618 = vunpack.c.l.b16 %v571
        %v619 = vunpack.c.h.b16 %v571
        %v620 = vunpack.c.l.b16 %v572
        %v621 = vunpack.c.h.b16 %v572
        %v622 = vunpack.c.l.b16 %v573
        %v623 = vunpack.c.h.b16 %v573
        %v624 = vunpack.c.l.b16 %v574
        %v625 = vunpack.c.h.b16 %v574
        %v626 = vunpack.c.l.b16 %v575
        %v627 = vunpack.c.h.b16 %v575
        %v628 = vunpack.c.l.b16 %v576
        %v629 = vunpack.c.h.b16 %v576
        %v630 = vunpack.c.l.b16 %v577
        %v631 = vunpack.c.h.b16 %v577
        %v632 = vunpack.c.l.b16 %v578
        %v633 = vunpack.c.h.b16 %v578
        %v634 = vunpack.c.l.b16 %v579
        %v635 = vunpack.c.h.b16 %v579
        %v636 = vunpack.c.l.b16 %v580
        %v637 = vunpack.c.h.b16 %v580
        %v638 = vunpack.c.l.b16 %v581
        %v639 = vunpack.c.h.b16 %v581
        %v640 = vunpack.c.l.b16 %v582
        %v641 = vunpack.c.h.b16 %v582
        %v642 = vunpack.c.l.b16 %v583
        %v643 = vunpack.c.h.b16 %v583
        %v644 = vpack.c.b16 %v608, %v604
        %v645 = vpack.c.b16 %v609, %v605
        %v646 = vpack.c.b16 %v610, %v606
        %v647 = vpack.c.b16 %v611, %v607
        %v648 = vpack.c.b16 %v616, %v612
        %v649 = vpack.c.b16 %v617, %v613
        %v650 = vpack.c.b16 %v618, %v614
        %v651 = vpack.c.b16 %v619, %v615
        %v652 = vpack.c.b16 %v624, %v620
        %v653 = vpack.c.b16 %v625, %v621
        %v654 = vpack.c.b16 %v626, %v622
        %v655 = vpack.c.b16 %v627, %v623
        %v656 = vpack.c.b16 %v632, %v628
        %v657 = vpack.c.b16 %v633, %v629
        %v658 = vpack.c.b16 %v634, %v630
        %v659 = vpack.c.b16 %v635, %v631
        %v660 = vpack.c.b16 %v640, %v636
        %v661 = vpack.c.b16 %v641, %v637
        %v662 = vpack.c.b16 %v642, %v638
        %v663 = vpack.c.b16 %v643, %v639
        %684 = vmatprep.subr.bf16.mxu0 %v645
        %685 = vmatpush1.bf16.msra.mxu0 %v644
        %686 = vmatprep.subr.bf16.mxu0 %v649
        %687 = vmatpush1.bf16.msra.mxu0 %v648
        %688 = vmatprep.subr.bf16.mxu0 %v653
        %689 = vmatpush1.bf16.msra.mxu0 %v652
        %690 = vmatprep.subr.bf16.mxu0 %v657
        %691 = vmatpush1.bf16.msra.mxu0 %v656
        %692 = vmatprep.subr.bf16.mxu0 %v661
        %693 = vmatpush1.bf16.msra.mxu0 %v660
        %694 = vmatprep.subr.bf16.mxu0 0
        %695 = vmatpush1.bf16.msra.mxu0 0
        %696 = vmatprep.subr.bf16.mxu0 0
        %697 = vmatpush1.bf16.msra.mxu0 0
        %698 = vmatprep.subr.bf16.mxu0 0
        %699 = vmatpush1.bf16.msra.mxu0 0
        %700 = vmatprep.subr.bf16.mxu0 0
        %701 = vmatpush1.bf16.msra.mxu0 0
        %702 = vmatprep.subr.bf16.mxu0 0
        %703 = vmatpush1.bf16.msra.mxu0 0
        %704 = vmatprep.subr.bf16.mxu0 0
        %705 = vmatpush1.bf16.msra.mxu0 0
        %706 = vmatprep.subr.bf16.mxu0 0
        %707 = vmatpush1.bf16.msra.mxu0 0
        %708 = vmatprep.subr.bf16.mxu0 0
        %709 = vmatpush1.bf16.msra.mxu0 0
        %710 = vmatprep.subr.bf16.mxu0 0
        %711 = vmatpush1.bf16.msra.mxu0 0
        %712 = vmatprep.subr.bf16.mxu0 0
        %713 = vmatpush1.bf16.msra.mxu0 0
        %714 = vmatprep.subr.bf16.mxu0 0
        %715 = vmatpush1.bf16.msra.mxu0 0
        %716 = vmatprep.mubr.bf16.mxu0 0
        %717 = vmatmul.mubr.bf16.gmra.mrb[0].mxu0 %v475
        %v718 = vpop.f32.mrb[0].mxu0
        %v719 = vadd.f32 0.0, %v718
        %v720 = vpop.f32.mrb[0].mxu0
        %v721 = vadd.f32 0.0, %v720
        %v722 = vpop.f32.mrb[0].mxu0
        %v723 = vadd.f32 0.0, %v722
        %v724 = vpop.f32.mrb[0].mxu0
        %v725 = vadd.f32 0.0, %v724
        %726 = vdwg.mxu0
        %727 = vmatprep.subr.bf16.mxu0 %v647
        %728 = vmatpush1.bf16.msra.mxu0 %v646
        %729 = vmatprep.subr.bf16.mxu0 %v651
        %730 = vmatpush1.bf16.msra.mxu0 %v650
        %731 = vmatprep.subr.bf16.mxu0 %v655
        %732 = vmatpush1.bf16.msra.mxu0 %v654
        %733 = vmatprep.subr.bf16.mxu0 %v659
        %734 = vmatpush1.bf16.msra.mxu0 %v658
        %735 = vmatprep.subr.bf16.mxu0 %v663
        %736 = vmatpush1.bf16.msra.mxu0 %v662
        %737 = vmatprep.subr.bf16.mxu0 0
        %738 = vmatpush1.bf16.msra.mxu0 0
        %739 = vmatprep.subr.bf16.mxu0 0
        %740 = vmatpush1.bf16.msra.mxu0 0
        %741 = vmatprep.subr.bf16.mxu0 0
        %742 = vmatpush1.bf16.msra.mxu0 0
        %743 = vmatprep.subr.bf16.mxu0 0
        %744 = vmatpush1.bf16.msra.mxu0 0
        %745 = vmatprep.subr.bf16.mxu0 0
        %746 = vmatpush1.bf16.msra.mxu0 0
        %747 = vmatprep.subr.bf16.mxu0 0
        %748 = vmatpush1.bf16.msra.mxu0 0
        %749 = vmatprep.subr.bf16.mxu0 0
        %750 = vmatpush1.bf16.msra.mxu0 0
        %751 = vmatprep.subr.bf16.mxu0 0
        %752 = vmatpush1.bf16.msra.mxu0 0
        %753 = vmatprep.subr.bf16.mxu0 0
        %754 = vmatpush1.bf16.msra.mxu0 0
        %755 = vmatprep.subr.bf16.mxu0 0
        %756 = vmatpush1.bf16.msra.mxu0 0
        %757 = vmatprep.subr.bf16.mxu0 0
        %758 = vmatpush1.bf16.msra.mxu0 0
        %759 = vmatprep.mubr.bf16.mxu0 0
        %760 = vmatmul.mubr.bf16.gmra.mrb[0].mxu0 %v475
        %v761 = vpop.f32.mrb[0].mxu0
        %v762 = vadd.f32 0.0, %v761
        %v763 = vpop.f32.mrb[0].mxu0
        %v764 = vadd.f32 0.0, %v763
        %v765 = vpop.f32.mrb[0].mxu0
        %v766 = vadd.f32 0.0, %v765
        %v767 = vpop.f32.mrb[0].mxu0
        %v768 = vadd.f32 0.0, %v767
        %769 = vdwg.mxu0
        %v770 = vmax.f32 %v512, %v719
        %v771 = vmax.f32 %v514, %v721
        %v772 = vmax.f32 %v555, %v762
        %v773 = vmax.f32 %v557, %v764
        %v774 = vmax.f32 %v516, %v723
        %v775 = vmax.f32 %v518, %v725
        %v776 = vmax.f32 %v559, %v766
        %v777 = vmax.f32 %v561, %v768
        %s778 = scalar_lea.vmem %s323, 320 [#allocation2]
        %v779 = vld [vmem:[%s778] sm:$0xff]
        %v780 = vld [vmem:[%s778 + $0x8] sm:$0xff]
        %v781 = vld [vmem:[%s778 + $0x10] sm:$0xff]
        %v782 = vld [vmem:[%s778 + $0x18] sm:$0xff]
        %v783 = vld [vmem:[%s778 + $0x20] sm:$0xff]
        %v784 = vld [vmem:[%s778 + $0x28] sm:$0xff]
        %v785 = vld [vmem:[%s778 + $0x30] sm:$0xff]
        %v786 = vld [vmem:[%s778 + $0x38] sm:$0xff]
        %v787 = vld [vmem:[%s778 + $0x40] sm:$0xff]
        %v788 = vld [vmem:[%s778 + $0x48] sm:$0xff]
        %v789 = vld [vmem:[%s778 + $0x50] sm:$0xff]
        %v790 = vld [vmem:[%s778 + $0x58] sm:$0xff]
        %v791 = vld [vmem:[%s778 + $0x60] sm:$0xff]
        %v792 = vld [vmem:[%s778 + $0x68] sm:$0xff]
        %v793 = vld [vmem:[%s778 + $0x70] sm:$0xff]
        %v794 = vld [vmem:[%s778 + $0x78] sm:$0xff]
        %v795 = vld [vmem:[%s778 + $0x80] sm:$0xff]
        %v796 = vld [vmem:[%s778 + $0x88] sm:$0xff]
        %v797 = vld [vmem:[%s778 + $0x90] sm:$0xff]
        %v798 = vld [vmem:[%s778 + $0x98] sm:$0xff]
        %v819 = vunpack.c.l.b16 %v779
        %v820 = vunpack.c.h.b16 %v779
        %v821 = vunpack.c.l.b16 %v780
        %v822 = vunpack.c.h.b16 %v780
        %v823 = vunpack.c.l.b16 %v781
        %v824 = vunpack.c.h.b16 %v781
        %v825 = vunpack.c.l.b16 %v782
        %v826 = vunpack.c.h.b16 %v782
        %v827 = vunpack.c.l.b16 %v783
        %v828 = vunpack.c.h.b16 %v783
        %v829 = vunpack.c.l.b16 %v784
        %v830 = vunpack.c.h.b16 %v784
        %v831 = vunpack.c.l.b16 %v785
        %v832 = vunpack.c.h.b16 %v785
        %v833 = vunpack.c.l.b16 %v786
        %v834 = vunpack.c.h.b16 %v786
        %v835 = vunpack.c.l.b16 %v787
        %v836 = vunpack.c.h.b16 %v787
        %v837 = vunpack.c.l.b16 %v788
        %v838 = vunpack.c.h.b16 %v788
        %v839 = vunpack.c.l.b16 %v789
        %v840 = vunpack.c.h.b16 %v789
        %v841 = vunpack.c.l.b16 %v790
        %v842 = vunpack.c.h.b16 %v790
        %v843 = vunpack.c.l.b16 %v791
        %v844 = vunpack.c.h.b16 %v791
        %v845 = vunpack.c.l.b16 %v792
        %v846 = vunpack.c.h.b16 %v792
        %v847 = vunpack.c.l.b16 %v793
        %v848 = vunpack.c.h.b16 %v793
        %v849 = vunpack.c.l.b16 %v794
        %v850 = vunpack.c.h.b16 %v794
        %v851 = vunpack.c.l.b16 %v795
        %v852 = vunpack.c.h.b16 %v795
        %v853 = vunpack.c.l.b16 %v796
        %v854 = vunpack.c.h.b16 %v796
        %v855 = vunpack.c.l.b16 %v797
        %v856 = vunpack.c.h.b16 %v797
        %v857 = vunpack.c.l.b16 %v798
        %v858 = vunpack.c.h.b16 %v798
        %v859 = vpack.c.b16 %v823, %v819
        %v860 = vpack.c.b16 %v824, %v820
        %v861 = vpack.c.b16 %v825, %v821
        %v862 = vpack.c.b16 %v826, %v822
        %v863 = vpack.c.b16 %v831, %v827
        %v864 = vpack.c.b16 %v832, %v828
        %v865 = vpack.c.b16 %v833, %v829
        %v866 = vpack.c.b16 %v834, %v830
        %v867 = vpack.c.b16 %v839, %v835
        %v868 = vpack.c.b16 %v840, %v836
        %v869 = vpack.c.b16 %v841, %v837
        %v870 = vpack.c.b16 %v842, %v838
        %v871 = vpack.c.b16 %v847, %v843
        %v872 = vpack.c.b16 %v848, %v844
        %v873 = vpack.c.b16 %v849, %v845
        %v874 = vpack.c.b16 %v850, %v846
        %v875 = vpack.c.b16 %v855, %v851
        %v876 = vpack.c.b16 %v856, %v852
        %v877 = vpack.c.b16 %v857, %v853
        %v878 = vpack.c.b16 %v858, %v854
        %899 = vmatprep.subr.bf16.mxu0 %v860
        %900 = vmatpush1.bf16.msra.mxu0 %v859
        %901 = vmatprep.subr.bf16.mxu0 %v864
        %902 = vmatpush1.bf16.msra.mxu0 %v863
        %903 = vmatprep.subr.bf16.mxu0 %v868
        %904 = vmatpush1.bf16.msra.mxu0 %v867
        %905 = vmatprep.subr.bf16.mxu0 %v872
        %906 = vmatpush1.bf16.msra.mxu0 %v871
        %907 = vmatprep.subr.bf16.mxu0 %v876
        %908 = vmatpush1.bf16.msra.mxu0 %v875
        %909 = vmatprep.subr.bf16.mxu0 0
        %910 = vmatpush1.bf16.msra.mxu0 0
        %911 = vmatprep.subr.bf16.mxu0 0
        %912 = vmatpush1.bf16.msra.mxu0 0
        %913 = vmatprep.subr.bf16.mxu0 0
        %914 = vmatpush1.bf16.msra.mxu0 0
        %915 = vmatprep.subr.bf16.mxu0 0
        %916 = vmatpush1.bf16.msra.mxu0 0
        %917 = vmatprep.subr.bf16.mxu0 0
        %918 = vmatpush1.bf16.msra.mxu0 0
        %919 = vmatprep.subr.bf16.mxu0 0
        %920 = vmatpush1.bf16.msra.mxu0 0
        %921 = vmatprep.subr.bf16.mxu0 0
        %922 = vmatpush1.bf16.msra.mxu0 0
        %923 = vmatprep.subr.bf16.mxu0 0
        %924 = vmatpush1.bf16.msra.mxu0 0
        %925 = vmatprep.subr.bf16.mxu0 0
        %926 = vmatpush1.bf16.msra.mxu0 0
        %927 = vmatprep.subr.bf16.mxu0 0
        %928 = vmatpush1.bf16.msra.mxu0 0
        %929 = vmatprep.subr.bf16.mxu0 0
        %930 = vmatpush1.bf16.msra.mxu0 0
        %931 = vmatprep.mubr.bf16.mxu0 0
        %932 = vmatmul.mubr.bf16.gmra.mrb[0].mxu0 %v475
        %v933 = vpop.f32.mrb[0].mxu0
        %v934 = vadd.f32 0.0, %v933
        %v935 = vpop.f32.mrb[0].mxu0
        %v936 = vadd.f32 0.0, %v935
        %v937 = vpop.f32.mrb[0].mxu0
        %v938 = vadd.f32 0.0, %v937
        %v939 = vpop.f32.mrb[0].mxu0
        %v940 = vadd.f32 0.0, %v939
        %941 = vdwg.mxu0
        %942 = vmatprep.subr.bf16.mxu0 %v862
        %943 = vmatpush1.bf16.msra.mxu0 %v861
        %944 = vmatprep.subr.bf16.mxu0 %v866
        %945 = vmatpush1.bf16.msra.mxu0 %v865
        %946 = vmatprep.subr.bf16.mxu0 %v870
        %947 = vmatpush1.bf16.msra.mxu0 %v869
        %948 = vmatprep.subr.bf16.mxu0 %v874
        %949 = vmatpush1.bf16.msra.mxu0 %v873
        %950 = vmatprep.subr.bf16.mxu0 %v878
        %951 = vmatpush1.bf16.msra.mxu0 %v877
        %952 = vmatprep.subr.bf16.mxu0 0
        %953 = vmatpush1.bf16.msra.mxu0 0
        %954 = vmatprep.subr.bf16.mxu0 0
        %955 = vmatpush1.bf16.msra.mxu0 0
        %956 = vmatprep.subr.bf16.mxu0 0
        %957 = vmatpush1.bf16.msra.mxu0 0
        %958 = vmatprep.subr.bf16.mxu0 0
        %959 = vmatpush1.bf16.msra.mxu0 0
        %960 = vmatprep.subr.bf16.mxu0 0
        %961 = vmatpush1.bf16.msra.mxu0 0
        %962 = vmatprep.subr.bf16.mxu0 0
        %963 = vmatpush1.bf16.msra.mxu0 0
        %964 = vmatprep.subr.bf16.mxu0 0
        %965 = vmatpush1.bf16.msra.mxu0 0
        %966 = vmatprep.subr.bf16.mxu0 0
        %967 = vmatpush1.bf16.msra.mxu0 0
        %968 = vmatprep.subr.bf16.mxu0 0
        %969 = vmatpush1.bf16.msra.mxu0 0
        %970 = vmatprep.subr.bf16.mxu0 0
        %971 = vmatpush1.bf16.msra.mxu0 0
        %972 = vmatprep.subr.bf16.mxu0 0
        %973 = vmatpush1.bf16.msra.mxu0 0
        %974 = vmatprep.mubr.bf16.mxu0 0
        %975 = vmatmul.mubr.bf16.gmra.mrb[0].mxu0 %v475
        %v976 = vpop.f32.mrb[0].mxu0
        %v977 = vadd.f32 0.0, %v976
        %v978 = vpop.f32.mrb[0].mxu0
        %v979 = vadd.f32 0.0, %v978
        %v980 = vpop.f32.mrb[0].mxu0
        %v981 = vadd.f32 0.0, %v980
        %v982 = vpop.f32.mrb[0].mxu0
        %v983 = vadd.f32 0.0, %v982
        %984 = vdwg.mxu0
        %v985 = vmax.f32 %v770, %v934
        %v986 = vmax.f32 %v771, %v936
        %v987 = vmax.f32 %v772, %v977
        %v988 = vmax.f32 %v773, %v979
        %v989 = vmax.f32 %v774, %v938
        %v990 = vmax.f32 %v775, %v940
        %v991 = vmax.f32 %v776, %v981
        %v992 = vmax.f32 %v777, %v983
        %s993 = scalar_lea.vmem %s323, 480 [#allocation2]
        %v994 = vld [vmem:[%s993] sm:$0xff]
        %v995 = vld [vmem:[%s993 + $0x8] sm:$0xff]
        %v996 = vld [vmem:[%s993 + $0x10] sm:$0xff]
        %v997 = vld [vmem:[%s993 + $0x18] sm:$0xff]
        %v998 = vld [vmem:[%s993 + $0x20] sm:$0xff]
        %v999 = vld [vmem:[%s993 + $0x28] sm:$0xff]
        %v1000 = vld [vmem:[%s993 + $0x30] sm:$0xff]
        %v1001 = vld [vmem:[%s993 + $0x38] sm:$0xff]
        %v1002 = vld [vmem:[%s993 + $0x40] sm:$0xff]
        %v1003 = vld [vmem:[%s993 + $0x48] sm:$0xff]
        %v1004 = vld [vmem:[%s993 + $0x50] sm:$0xff]
        %v1005 = vld [vmem:[%s993 + $0x58] sm:$0xff]
        %v1006 = vld [vmem:[%s993 + $0x60] sm:$0xff]
        %v1007 = vld [vmem:[%s993 + $0x68] sm:$0xff]
        %v1008 = vld [vmem:[%s993 + $0x70] sm:$0xff]
        %v1009 = vld [vmem:[%s993 + $0x78] sm:$0xff]
        %v1010 = vld [vmem:[%s993 + $0x80] sm:$0xff]
        %v1011 = vld [vmem:[%s993 + $0x88] sm:$0xff]
        %v1012 = vld [vmem:[%s993 + $0x90] sm:$0xff]
        %v1013 = vld [vmem:[%s993 + $0x98] sm:$0xff]
        %v1034 = vunpack.c.l.b16 %v994
        %v1035 = vunpack.c.h.b16 %v994
        %v1036 = vunpack.c.l.b16 %v995
        %v1037 = vunpack.c.h.b16 %v995
        %v1038 = vunpack.c.l.b16 %v996
        %v1039 = vunpack.c.h.b16 %v996
        %v1040 = vunpack.c.l.b16 %v997
        %v1041 = vunpack.c.h.b16 %v997
        %v1042 = vunpack.c.l.b16 %v998
        %v1043 = vunpack.c.h.b16 %v998
        %v1044 = vunpack.c.l.b16 %v999
        %v1045 = vunpack.c.h.b16 %v999
        %v1046 = vunpack.c.l.b16 %v1000
        %v1047 = vunpack.c.h.b16 %v1000
        %v1048 = vunpack.c.l.b16 %v1001
        %v1049 = vunpack.c.h.b16 %v1001
        %v1050 = vunpack.c.l.b16 %v1002
        %v1051 = vunpack.c.h.b16 %v1002
        %v1052 = vunpack.c.l.b16 %v1003
        %v1053 = vunpack.c.h.b16 %v1003
        %v1054 = vunpack.c.l.b16 %v1004
        %v1055 = vunpack.c.h.b16 %v1004
        %v1056 = vunpack.c.l.b16 %v1005
        %v1057 = vunpack.c.h.b16 %v1005
        %v1058 = vunpack.c.l.b16 %v1006
        %v1059 = vunpack.c.h.b16 %v1006
        %v1060 = vunpack.c.l.b16 %v1007
        %v1061 = vunpack.c.h.b16 %v1007
        %v1062 = vunpack.c.l.b16 %v1008
        %v1063 = vunpack.c.h.b16 %v1008
        %v1064 = vunpack.c.l.b16 %v1009
        %v1065 = vunpack.c.h.b16 %v1009
        %v1066 = vunpack.c.l.b16 %v1010
        %v1067 = vunpack.c.h.b16 %v1010
        %v1068 = vunpack.c.l.b16 %v1011
        %v1069 = vunpack.c.h.b16 %v1011
        %v1070 = vunpack.c.l.b16 %v1012
        %v1071 = vunpack.c.h.b16 %v1012
        %v1072 = vunpack.c.l.b16 %v1013
        %v1073 = vunpack.c.h.b16 %v1013
        %v1074 = vpack.c.b16 %v1038, %v1034
        %v1075 = vpack.c.b16 %v1039, %v1035
        %v1076 = vpack.c.b16 %v1040, %v1036
        %v1077 = vpack.c.b16 %v1041, %v1037
        %v1078 = vpack.c.b16 %v1046, %v1042
        %v1079 = vpack.c.b16 %v1047, %v1043
        %v1080 = vpack.c.b16 %v1048, %v1044
        %v1081 = vpack.c.b16 %v1049, %v1045
        %v1082 = vpack.c.b16 %v1054, %v1050
        %v1083 = vpack.c.b16 %v1055, %v1051
        %v1084 = vpack.c.b16 %v1056, %v1052
        %v1085 = vpack.c.b16 %v1057, %v1053
        %v1086 = vpack.c.b16 %v1062, %v1058
        %v1087 = vpack.c.b16 %v1063, %v1059
        %v1088 = vpack.c.b16 %v1064, %v1060
        %v1089 = vpack.c.b16 %v1065, %v1061
        %v1090 = vpack.c.b16 %v1070, %v1066
        %v1091 = vpack.c.b16 %v1071, %v1067
        %v1092 = vpack.c.b16 %v1072, %v1068
        %v1093 = vpack.c.b16 %v1073, %v1069
        %1114 = vmatprep.subr.bf16.mxu0 %v1075
        %1115 = vmatpush1.bf16.msra.mxu0 %v1074
        %1116 = vmatprep.subr.bf16.mxu0 %v1079
        %1117 = vmatpush1.bf16.msra.mxu0 %v1078
        %1118 = vmatprep.subr.bf16.mxu0 %v1083
        %1119 = vmatpush1.bf16.msra.mxu0 %v1082
        %1120 = vmatprep.subr.bf16.mxu0 %v1087
        %1121 = vmatpush1.bf16.msra.mxu0 %v1086
        %1122 = vmatprep.subr.bf16.mxu0 %v1091
        %1123 = vmatpush1.bf16.msra.mxu0 %v1090
        %1124 = vmatprep.subr.bf16.mxu0 0
        %1125 = vmatpush1.bf16.msra.mxu0 0
        %1126 = vmatprep.subr.bf16.mxu0 0
        %1127 = vmatpush1.bf16.msra.mxu0 0
        %1128 = vmatprep.subr.bf16.mxu0 0
        %1129 = vmatpush1.bf16.msra.mxu0 0
        %1130 = vmatprep.subr.bf16.mxu0 0
        %1131 = vmatpush1.bf16.msra.mxu0 0
        %1132 = vmatprep.subr.bf16.mxu0 0
        %1133 = vmatpush1.bf16.msra.mxu0 0
        %1134 = vmatprep.subr.bf16.mxu0 0
        %1135 = vmatpush1.bf16.msra.mxu0 0
        %1136 = vmatprep.subr.bf16.mxu0 0
        %1137 = vmatpush1.bf16.msra.mxu0 0
        %1138 = vmatprep.subr.bf16.mxu0 0
        %1139 = vmatpush1.bf16.msra.mxu0 0
        %1140 = vmatprep.subr.bf16.mxu0 0
        %1141 = vmatpush1.bf16.msra.mxu0 0
        %1142 = vmatprep.subr.bf16.mxu0 0
        %1143 = vmatpush1.bf16.msra.mxu0 0
        %1144 = vmatprep.subr.bf16.mxu0 0
        %1145 = vmatpush1.bf16.msra.mxu0 0
        %1146 = vmatprep.mubr.bf16.mxu0 0
        %1147 = vmatmul.mubr.bf16.gmra.mrb[0].mxu0 %v475
        %v1148 = vpop.f32.mrb[0].mxu0
        %v1149 = vadd.f32 0.0, %v1148
        %v1150 = vpop.f32.mrb[0].mxu0
        %v1151 = vadd.f32 0.0, %v1150
        %v1152 = vpop.f32.mrb[0].mxu0
        %v1153 = vadd.f32 0.0, %v1152
        %v1154 = vpop.f32.mrb[0].mxu0
        %v1155 = vadd.f32 0.0, %v1154
        %1156 = vdwg.mxu0
        %1157 = vmatprep.subr.bf16.mxu0 %v1077
        %1158 = vmatpush1.bf16.msra.mxu0 %v1076
        %1159 = vmatprep.subr.bf16.mxu0 %v1081
        %1160 = vmatpush1.bf16.msra.mxu0 %v1080
        %1161 = vmatprep.subr.bf16.mxu0 %v1085
        %1162 = vmatpush1.bf16.msra.mxu0 %v1084
        %1163 = vmatprep.subr.bf16.mxu0 %v1089
        %1164 = vmatpush1.bf16.msra.mxu0 %v1088
        %1165 = vmatprep.subr.bf16.mxu0 %v1093
        %1166 = vmatpush1.bf16.msra.mxu0 %v1092
        %1167 = vmatprep.subr.bf16.mxu0 0
        %1168 = vmatpush1.bf16.msra.mxu0 0
        %1169 = vmatprep.subr.bf16.mxu0 0
        %1170 = vmatpush1.bf16.msra.mxu0 0
        %1171 = vmatprep.subr.bf16.mxu0 0
        %1172 = vmatpush1.bf16.msra.mxu0 0
        %1173 = vmatprep.subr.bf16.mxu0 0
        %1174 = vmatpush1.bf16.msra.mxu0 0
        %1175 = vmatprep.subr.bf16.mxu0 0
        %1176 = vmatpush1.bf16.msra.mxu0 0
        %1177 = vmatprep.subr.bf16.mxu0 0
        %1178 = vmatpush1.bf16.msra.mxu0 0
        %1179 = vmatprep.subr.bf16.mxu0 0
        %1180 = vmatpush1.bf16.msra.mxu0 0
        %1181 = vmatprep.subr.bf16.mxu0 0
        %1182 = vmatpush1.bf16.msra.mxu0 0
        %1183 = vmatprep.subr.bf16.mxu0 0
        %1184 = vmatpush1.bf16.msra.mxu0 0
        %1185 = vmatprep.subr.bf16.mxu0 0
        %1186 = vmatpush1.bf16.msra.mxu0 0
        %1187 = vmatprep.subr.bf16.mxu0 0
        %1188 = vmatpush1.bf16.msra.mxu0 0
        %1189 = vmatprep.mubr.bf16.mxu0 0
        %1190 = vmatmul.mubr.bf16.gmra.mrb[0].mxu0 %v475
        %v1191 = vpop.f32.mrb[0].mxu0
        %v1192 = vadd.f32 0.0, %v1191
        %v1193 = vpop.f32.mrb[0].mxu0
        %v1194 = vadd.f32 0.0, %v1193
        %v1195 = vpop.f32.mrb[0].mxu0
        %v1196 = vadd.f32 0.0, %v1195
        %v1197 = vpop.f32.mrb[0].mxu0
        %v1198 = vadd.f32 0.0, %v1197
        %1199 = vdwg.mxu0
        %v1200 = vmax.f32 %v985, %v1149
        %v1201 = vmax.f32 %v986, %v1151
        %v1202 = vmax.f32 %v987, %v1192
        %v1203 = vmax.f32 %v988, %v1194
        %v1204 = vmax.f32 %v989, %v1153
        %v1205 = vmax.f32 %v990, %v1155
        %v1206 = vmax.f32 %v991, %v1196
        %v1207 = vmax.f32 %v992, %v1198
        %v1208 = vld [vmem:[%s1] sm:$0xff]
        %v1209 = vld [vmem:[%s1 + $0x8] sm:$0xff]
        %1211 = vset.pattern.permute.xlu0 0
        %1212 = vperm.xlu0 %1211, %v1208
        %v1213 = vpop.permute.xlu0 %1212
        %1216 = vset.pattern.permute.xlu0 0
        %1217 = vperm.xlu0 %1216, %v1209
        %v1218 = vpop.permute.xlu0 %1217
        %v1220 = vadd.f32 %v1200, %v1213
        %v1221 = vadd.f32 %v1201, %v1213
        %v1222 = vadd.f32 %v1202, %v1213
        %v1223 = vadd.f32 %v1203, %v1213
        %v1224 = vadd.f32 %v1204, %v1218
        %v1225 = vadd.f32 %v1205, %v1218
        %v1226 = vadd.f32 %v1206, %v1218
        %v1227 = vadd.f32 %v1207, %v1218
        %v1228 = vmax.f32 %v1220, 0.0
        %v1229 = vmax.f32 %v1221, 0.0
        %v1230 = vmax.f32 %v1222, 0.0
        %v1231 = vmax.f32 %v1223, 0.0
        %v1232 = vmax.f32 %v1224, 0.0
        %v1233 = vmax.f32 %v1225, 0.0
        %v1234 = vmax.f32 %v1226, 0.0
        %v1235 = vmax.f32 %v1227, 0.0
        %v1236 = vpack.c.bf16 %v1232, %v1228
        %v1237 = vpack.c.bf16 %v1233, %v1229
        %v1238 = vpack.c.bf16 %v1234, %v1230
        %v1239 = vpack.c.bf16 %v1235, %v1231
        %v1244 = vunpack.c.l.b16 %v1236
        %v1245 = vunpack.c.l.b16 %v1237
        %v1246 = vunpack.c.l.b16 %v1238
        %v1247 = vunpack.c.l.b16 %v1239
        %v1248 = vunpack.c.h.b16 %v1236
        %v1249 = vunpack.c.h.b16 %v1237
        %v1250 = vunpack.c.h.b16 %v1238
        %v1251 = vunpack.c.h.b16 %v1239
        %v1252 = vpack.c.b16 %v1245, %v1244
        %v1253 = vpack.c.b16 %v1247, %v1246
        %v1254 = vpack.c.b16 %v1249, %v1248
        %v1255 = vpack.c.b16 %v1251, %v1250
        %1260 = vst [vmem:[%s342] sm:$0xff] %v1252
        %1261 = vst [vmem:[%s342 + $0x8] sm:$0xff] %v1253
        %1262 = vst [vmem:[%s342 + $0x10] sm:$0xff] %v1254
        %1263 = vst [vmem:[%s342 + $0x18] sm:$0xff] %v1255
        %s1264 = sand.u32 %s90, 1
        %s1265 = sand.u32 %s90, 1
        %s1266 = smul.addr %s1265, 32
        %s1267 = scalar_lea.vmem [#allocation3], %s1266
        // Predicated region
        $region56: #{convnet_forward.3} parent=50 // pred_check
          %p1268 = pneg %p100
        $region57: #{convnet_forward.3} parent=50 // pred_check_branch
          %1270 = sbr.rel (%p1268) target = $region59
        $region58: #{convnet_forward.3} parent=50 // pred_region
          %s1271 = smul.u32 4, %s14
          %s1272 = smul.addr %s1271, 4
          %s1273 = scalar_lea.vmem %s3, %s1272
          // Predicated region
          $region60: #{convnet_forward.3} parent=58 // pred_check
            _
          $region61: #{convnet_forward.3} parent=58 // pred_check_branch
            %1275 = sbr.rel (0) target = $region63
          $region62: #{convnet_forward.3} parent=58 // pred_region
            // Predicated region
            $region64: #{convnet_forward.3} parent=62 // pred_check
              _
            $region65: #{convnet_forward.3} parent=62 // pred_check_branch
              %1277 = sbr.rel (0) target = $region67
            $region66: #{convnet_forward.3} parent=62 // pred_region
              loop: start=0, step=1, limit=1
              $region68: #{convnet_forward.3} parent=66 // loop_pre_header
                _
              $region69: #{convnet_forward.3} parent=66 // loop_header
                %s1279 = sphi 0, %s1283
                %p1280 = scmp.ge.s32.totalorder %s1279, 1
                %s1284 = sphi %s1267, %s1267
                %s1285 = sphi %s1273, %s1273
              $region70: #{convnet_forward.3} parent=66 // loop_header_branch
                %1282 = sbr.rel (%p1280) target = $region74
              $region71: #{convnet_forward.3} parent=66 // loop_body
                %v1286 = vld [vmem:[%s1284] sm:$0xff]
                %1287 = vst [vmem:[%s1285] sm:$0xff] %v1286
                %v1288 = vld [vmem:[%s1284 + $0x8] sm:$0xff]
                %1289 = vst [vmem:[%s1285 + $0x8] sm:$0xff] %v1288
                %v1290 = vld [vmem:[%s1284 + $0x10] sm:$0xff]
                %1291 = vst [vmem:[%s1285 + $0x20] sm:$0xff] %v1290
                %v1292 = vld [vmem:[%s1284 + $0x18] sm:$0xff]
                %1293 = vst [vmem:[%s1285 + $0x28] sm:$0xff] %v1292
              $region72: #{convnet_forward.3} parent=66 // loop_footer
                %s1283 = sadd.s32 1, %s1279
              $region73: #{convnet_forward.3} parent=66 // loop_footer_branch
                %1278 = sbr.rel target = $region69
              $region74: #{convnet_forward.3} parent=66 // loop_exit
                _
            $region67: #{convnet_forward.3} parent=62 // pred_fallthru
              _
            // Predicated region
            $region75: #{convnet_forward.3} parent=62 // pred_check
              _
            $region76: #{convnet_forward.3} parent=62 // pred_check_branch
              %1295 = sbr.rel target = $region78
            $region77: #{convnet_forward.3} parent=62 // pred_region
              _
            $region78: #{convnet_forward.3} parent=62 // pred_fallthru
              _
          $region63: #{convnet_forward.3} parent=58 // pred_fallthru
            _
          %1296 = vnop
        $region59: #{convnet_forward.3} parent=50 // pred_fallthru
          _
      $region51: #{convnet_forward.3} parent=5 // pred_fallthru
        _
      %p1297 = scmp.le.s32.totalorder 2, %s9
      // Predicated region
      $region79: #{convnet_forward.3} parent=5 // pred_check
        %p1298 = pneg %p1297
      $region80: #{convnet_forward.3} parent=5 // pred_check_branch
        %1300 = sbr.rel (%p1298) target = $region82
      $region81: #{convnet_forward.3} parent=5 // pred_region
        %s1301 = ssub.s32 %s9, 2
        // Predicated region
        $region83: #{convnet_forward.3} parent=81 // pred_check
          %p1302 = pneg %p106
        $region84: #{convnet_forward.3} parent=81 // pred_check_branch
          %1304 = sbr.rel (%p1302) target = $region86
        $region85: #{convnet_forward.3} parent=81 // pred_region
          %s1305 = sand.u32 %s91, 1
          %s1306 = sand.u32 %s91, 1
          %s1307 = smul.addr %s1306, 32
          %s1308 = scalar_lea.vmem [#allocation3], %s1307
        $region86: #{convnet_forward.3} parent=81 // pred_fallthru
          _
      $region82: #{convnet_forward.3} parent=5 // pred_fallthru
        _
    $region6: #{convnet_forward.3} parent=1 // loop_footer
      %s13 = sadd.s32 1, %s9
    $region7: #{convnet_forward.3} parent=1 // loop_footer_branch
      %8 = sbr.rel target = $region3
    $region8: #{convnet_forward.3} parent=1 // loop_exit
      _

// kernel: convnet_forward.4
$region0: #{convnet_forward.4}
  #allocation0 [shape = 'u32[]', space=smem, size = 0x4, offset = 0x4, fixed_abs, tag = 'smem constant byte address 0x4 - core index']
  #allocation1 [shape = 'u32[144,128]{1,0:T(1,128)}', space=vmem, size = 0x12000, scoped, tag = 'internal scratch']
  %s0 = inlined_call_operand.vmem [shape: bf16[16,152], index: 0, kind: input, shape index: {}]
  %s1 = inlined_call_operand.vmem [shape: f32[16,1], index: 1, kind: input, shape index: {}]
  %s2 = inlined_call_operand.vmem [shape: bf16[4,152,128], index: 2, kind: input, shape index: {}]
  %s3 = inlined_call_operand.vmem [shape: bf16[16,128], index: 3, kind: output, shape index: {}]
  %s4 = sld [smem:[#allocation0]]
  $region22: #{convnet_forward.4} parent=0
    _
  %s6 = ssub.s32 1, %s4
  %s7 = scalar_select 0, %s6, %s4
  // Predicated region
  $region2: #{convnet_forward.4} parent=0 // pred_check
    _
  $region3: #{convnet_forward.4} parent=0 // pred_check_branch
    %9 = sbr.rel (0) target = $region5
  $region4: #{convnet_forward.4} parent=0 // pred_region
    _
  $region5: #{convnet_forward.4} parent=0 // pred_fallthru
    _
  // Predicated region
  $region6: #{convnet_forward.4} parent=0 // pred_check
    _
  $region7: #{convnet_forward.4} parent=0 // pred_check_branch
    %11 = sbr.rel (0) target = $region9
  $region8: #{convnet_forward.4} parent=0 // pred_region
    _
  $region9: #{convnet_forward.4} parent=0 // pred_fallthru
    _
  // Predicated region
  $region10: #{convnet_forward.4} parent=0 // pred_check
    _
  $region11: #{convnet_forward.4} parent=0 // pred_check_branch
    %13 = sbr.rel (0) target = $region13
  $region12: #{convnet_forward.4} parent=0 // pred_region
    _
  $region13: #{convnet_forward.4} parent=0 // pred_fallthru
    _
  %v15 = vld [vmem:[%s0] sm:$0xff]
  %v16 = vld [vmem:[%s0 + $0x8] sm:$0xff]
  %v17 = vld [vmem:[%s2] sm:$0xf]
  %v18 = vld [vmem:[%s2 + $0x4] sm:$0xf]
  %v19 = vld [vmem:[%s2 + $0x8] sm:$0xf]
  %v20 = vld [vmem:[%s2 + $0xc] sm:$0xf]
  %v21 = vld [vmem:[%s2 + $0x10] sm:$0xf]
  %v22 = vld [vmem:[%s2 + $0x14] sm:$0xf]
  %v23 = vld [vmem:[%s2 + $0x18] sm:$0xf]
  %v24 = vld [vmem:[%s2 + $0x1c] sm:$0xf]
  %v25 = vld [vmem:[%s2 + $0x20] sm:$0xf]
  %v26 = vld [vmem:[%s2 + $0x24] sm:$0xf]
  %v27 = vld [vmem:[%s2 + $0x28] sm:$0xf]
  %v28 = vld [vmem:[%s2 + $0x2c] sm:$0xf]
  %v29 = vld [vmem:[%s2 + $0x30] sm:$0xf]
  %v30 = vld [vmem:[%s2 + $0x34] sm:$0xf]
  %v31 = vld [vmem:[%s2 + $0x38] sm:$0xf]
  %v32 = vld [vmem:[%s2 + $0x3c] sm:$0xf]
  %v33 = vld [vmem:[%s2 + $0x40] sm:$0xf]
  %v34 = vld [vmem:[%s2 + $0x44] sm:$0xf]
  %v35 = vld [vmem:[%s2 + $0x48] sm:$0xf]
  %v38 = vunpack.c.l.b16 %v15
  %v39 = vunpack.c.h.b16 %v15
  %v40 = vunpack.c.l.b16 %v16
  %v41 = vunpack.c.h.b16 %v16
  %v42 = vpack.c.b16 %v40, %v38
  %v43 = vpack.c.b16 %v41, %v39
  %v64 = vunpack.c.l.b16 %v17
  %v65 = vunpack.c.l.b16 %v18
  %v66 = vunpack.c.l.b16 %v19
  %v67 = vunpack.c.l.b16 %v20
  %v68 = vunpack.c.l.b16 %v21
  %v69 = vunpack.c.l.b16 %v22
  %v70 = vunpack.c.l.b16 %v23
  %v71 = vunpack.c.l.b16 %v24
  %v72 = vunpack.c.l.b16 %v25
  %v73 = vunpack.c.l.b16 %v26
  %v74 = vunpack.c.l.b16 %v27
  %v75 = vunpack.c.l.b16 %v28
  %v76 = vunpack.c.l.b16 %v29
  %v77 = vunpack.c.l.b16 %v30
  %v78 = vunpack.c.l.b16 %v31
  %v79 = vunpack.c.l.b16 %v32
  %v80 = vunpack.c.l.b16 %v33
  %v81 = vunpack.c.l.b16 %v34
  %v82 = vunpack.c.l.b16 %v35
  %v83 = vpack.c.b16 %v65, %v64
  %v84 = vpack.c.b16 %v67, %v66
  %v85 = vpack.c.b16 %v69, %v68
  %v86 = vpack.c.b16 %v71, %v70
  %v87 = vpack.c.b16 %v73, %v72
  %v88 = vpack.c.b16 %v75, %v74
  %v89 = vpack.c.b16 %v77, %v76
  %v90 = vpack.c.b16 %v79, %v78
  %v91 = vpack.c.b16 %v81, %v80
  %v92 = vpack.c.b16 %v82, %v82
  %vm102 = vcmask 195584
  %v104 = vsel %vm102, %v43, 0
  %vm106 = vcmask 1043456
  %v108 = vsel %vm106, %v92, 0
  %110 = vmatprep.subr.bf16.mxu0 0
  %111 = vmatpush1.bf16.msra.mxu0 %v83
  %112 = vmatprep.subr.bf16.mxu0 0
  %113 = vmatpush1.bf16.msra.mxu0 %v84
  %114 = vmatprep.subr.bf16.mxu0 0
  %115 = vmatpush1.bf16.msra.mxu0 %v85
  %116 = vmatprep.subr.bf16.mxu0 0
  %117 = vmatpush1.bf16.msra.mxu0 %v86
  %118 = vmatprep.subr.bf16.mxu0 0
  %119 = vmatpush1.bf16.msra.mxu0 %v87
  %120 = vmatprep.subr.bf16.mxu0 0
  %121 = vmatpush1.bf16.msra.mxu0 %v88
  %122 = vmatprep.subr.bf16.mxu0 0
  %123 = vmatpush1.bf16.msra.mxu0 %v89
  %124 = vmatprep.subr.bf16.mxu0 0
  %125 = vmatpush1.bf16.msra.mxu0 %v90
  %126 = vmatprep.subr.bf16.mxu0 0
  %127 = vmatpush1.bf16.msra.mxu0 %v91
  %128 = vmatprep.subr.bf16.mxu0 0
  %129 = vmatpush1.bf16.msra.mxu0 %v108
  %130 = vmatprep.subr.bf16.mxu0 0
  %131 = vmatpush1.bf16.msra.mxu0 0
  %132 = vmatprep.subr.bf16.mxu0 0
  %133 = vmatpush1.bf16.msra.mxu0 0
  %134 = vmatprep.subr.bf16.mxu0 0
  %135 = vmatpush1.bf16.msra.mxu0 0
  %136 = vmatprep.subr.bf16.mxu0 0
  %137 = vmatpush1.bf16.msra.mxu0 0
  %138 = vmatprep.subr.bf16.mxu0 0
  %139 = vmatpush1.bf16.msra.mxu0 0
  %140 = vmatprep.subr.bf16.mxu0 0
  %141 = vmatpush1.bf16.msra.mxu0 0
  %142 = vmatprep.mubr.bf16.mxu0 %v104
  %143 = vmatmul.mubr.bf16.gmra.mrb[0].mxu0 %v42
  %v144 = vpop.f32.mrb[0].mxu0
  %v145 = vadd.f32 0.0, %v144
  %v146 = vpop.f32.mrb[0].mxu0
  %v147 = vpop.f32.mrb[0].mxu0
  %v148 = vadd.f32 0.0, %v147
  %v149 = vpop.f32.mrb[0].mxu0
  %150 = vdwg.mxu0
  %s151 = scalar_lea.vmem %s2, 76
  %v152 = vld [vmem:[%s151] sm:$0xf]
  %v153 = vld [vmem:[%s151 + $0x4] sm:$0xf]
  %v154 = vld [vmem:[%s151 + $0x8] sm:$0xf]
  %v155 = vld [vmem:[%s151 + $0xc] sm:$0xf]
  %v156 = vld [vmem:[%s151 + $0x10] sm:$0xf]
  %v157 = vld [vmem:[%s151 + $0x14] sm:$0xf]
  %v158 = vld [vmem:[%s151 + $0x18] sm:$0xf]
  %v159 = vld [vmem:[%s151 + $0x1c] sm:$0xf]
  %v160 = vld [vmem:[%s151 + $0x20] sm:$0xf]
  %v161 = vld [vmem:[%s151 + $0x24] sm:$0xf]
  %v162 = vld [vmem:[%s151 + $0x28] sm:$0xf]
  %v163 = vld [vmem:[%s151 + $0x2c] sm:$0xf]
  %v164 = vld [vmem:[%s151 + $0x30] sm:$0xf]
  %v165 = vld [vmem:[%s151 + $0x34] sm:$0xf]
  %v166 = vld [vmem:[%s151 + $0x38] sm:$0xf]
  %v167 = vld [vmem:[%s151 + $0x3c] sm:$0xf]
  %v168 = vld [vmem:[%s151 + $0x40] sm:$0xf]
  %v169 = vld [vmem:[%s151 + $0x44] sm:$0xf]
  %v170 = vld [vmem:[%s151 + $0x48] sm:$0xf]
  %v190 = vunpack.c.l.b16 %v152
  %v191 = vunpack.c.l.b16 %v153
  %v192 = vunpack.c.l.b16 %v154
  %v193 = vunpack.c.l.b16 %v155
  %v194 = vunpack.c.l.b16 %v156
  %v195 = vunpack.c.l.b16 %v157
  %v196 = vunpack.c.l.b16 %v158
  %v197 = vunpack.c.l.b16 %v159
  %v198 = vunpack.c.l.b16 %v160
  %v199 = vunpack.c.l.b16 %v161
  %v200 = vunpack.c.l.b16 %v162
  %v201 = vunpack.c.l.b16 %v163
  %v202 = vunpack.c.l.b16 %v164
  %v203 = vunpack.c.l.b16 %v165
  %v204 = vunpack.c.l.b16 %v166
  %v205 = vunpack.c.l.b16 %v167
  %v206 = vunpack.c.l.b16 %v168
  %v207 = vunpack.c.l.b16 %v169
  %v208 = vunpack.c.l.b16 %v170
  %v209 = vpack.c.b16 %v191, %v190
  %v210 = vpack.c.b16 %v193, %v192
  %v211 = vpack.c.b16 %v195, %v194
  %v212 = vpack.c.b16 %v197, %v196
  %v213 = vpack.c.b16 %v199, %v198
  %v214 = vpack.c.b16 %v201, %v200
  %v215 = vpack.c.b16 %v203, %v202
  %v216 = vpack.c.b16 %v205, %v204
  %v217 = vpack.c.b16 %v207, %v206
  %v218 = vpack.c.b16 %v208, %v208
  %v229 = vsel %vm106, %v218, 0
  %231 = vmatprep.subr.bf16.mxu0 0
  %232 = vmatpush1.bf16.msra.mxu0 %v209
  %233 = vmatprep.subr.bf16.mxu0 0
  %234 = vmatpush1.bf16.msra.mxu0 %v210
  %235 = vmatprep.subr.bf16.mxu0 0
  %236 = vmatpush1.bf16.msra.mxu0 %v211
  %237 = vmatprep.subr.bf16.mxu0 0
  %238 = vmatpush1.bf16.msra.mxu0 %v212
  %239 = vmatprep.subr.bf16.mxu0 0
  %240 = vmatpush1.bf16.msra.mxu0 %v213
  %241 = vmatprep.subr.bf16.mxu0 0
  %242 = vmatpush1.bf16.msra.mxu0 %v214
  %243 = vmatprep.subr.bf16.mxu0 0
  %244 = vmatpush1.bf16.msra.mxu0 %v215
  %245 = vmatprep.subr.bf16.mxu0 0
  %246 = vmatpush1.bf16.msra.mxu0 %v216
  %247 = vmatprep.subr.bf16.mxu0 0
  %248 = vmatpush1.bf16.msra.mxu0 %v217
  %249 = vmatprep.subr.bf16.mxu0 0
  %250 = vmatpush1.bf16.msra.mxu0 %v229
  %251 = vmatprep.subr.bf16.mxu0 0
  %252 = vmatpush1.bf16.msra.mxu0 0
  %253 = vmatprep.subr.bf16.mxu0 0
  %254 = vmatpush1.bf16.msra.mxu0 0
  %255 = vmatprep.subr.bf16.mxu0 0
  %256 = vmatpush1.bf16.msra.mxu0 0
  %257 = vmatprep.subr.bf16.mxu0 0
  %258 = vmatpush1.bf16.msra.mxu0 0
  %259 = vmatprep.subr.bf16.mxu0 0
  %260 = vmatpush1.bf16.msra.mxu0 0
  %261 = vmatprep.subr.bf16.mxu0 0
  %262 = vmatpush1.bf16.msra.mxu0 0
  %263 = vmatprep.mubr.bf16.mxu0 %v104
  %264 = vmatmul.mubr.bf16.gmra.mrb[0].mxu0 %v42
  %v265 = vpop.f32.mrb[0].mxu0
  %v266 = vadd.f32 0.0, %v265
  %v267 = vpop.f32.mrb[0].mxu0
  %v268 = vpop.f32.mrb[0].mxu0
  %v269 = vadd.f32 0.0, %v268
  %v270 = vpop.f32.mrb[0].mxu0
  %271 = vdwg.mxu0
  %v272 = vmax.f32 %v145, %v266
  %v273 = vmax.f32 %v148, %v269
  %s274 = scalar_lea.vmem %s2, 152
  %v275 = vld [vmem:[%s274] sm:$0xf]
  %v276 = vld [vmem:[%s274 + $0x4] sm:$0xf]
  %v277 = vld [vmem:[%s274 + $0x8] sm:$0xf]
  %v278 = vld [vmem:[%s274 + $0xc] sm:$0xf]
  %v279 = vld [vmem:[%s274 + $0x10] sm:$0xf]
  %v280 = vld [vmem:[%s274 + $0x14] sm:$0xf]
  %v281 = vld [vmem:[%s274 + $0x18] sm:$0xf]
  %v282 = vld [vmem:[%s274 + $0x1c] sm:$0xf]
  %v283 = vld [vmem:[%s274 + $0x20] sm:$0xf]
  %v284 = vld [vmem:[%s274 + $0x24] sm:$0xf]
  %v285 = vld [vmem:[%s274 + $0x28] sm:$0xf]
  %v286 = vld [vmem:[%s274 + $0x2c] sm:$0xf]
  %v287 = vld [vmem:[%s274 + $0x30] sm:$0xf]
  %v288 = vld [vmem:[%s274 + $0x34] sm:$0xf]
  %v289 = vld [vmem:[%s274 + $0x38] sm:$0xf]
  %v290 = vld [vmem:[%s274 + $0x3c] sm:$0xf]
  %v291 = vld [vmem:[%s274 + $0x40] sm:$0xf]
  %v292 = vld [vmem:[%s274 + $0x44] sm:$0xf]
  %v293 = vld [vmem:[%s274 + $0x48] sm:$0xf]
  %v313 = vunpack.c.l.b16 %v275
  %v314 = vunpack.c.l.b16 %v276
  %v315 = vunpack.c.l.b16 %v277
  %v316 = vunpack.c.l.b16 %v278
  %v317 = vunpack.c.l.b16 %v279
  %v318 = vunpack.c.l.b16 %v280
  %v319 = vunpack.c.l.b16 %v281
  %v320 = vunpack.c.l.b16 %v282
  %v321 = vunpack.c.l.b16 %v283
  %v322 = vunpack.c.l.b16 %v284
  %v323 = vunpack.c.l.b16 %v285
  %v324 = vunpack.c.l.b16 %v286
  %v325 = vunpack.c.l.b16 %v287
  %v326 = vunpack.c.l.b16 %v288
  %v327 = vunpack.c.l.b16 %v289
  %v328 = vunpack.c.l.b16 %v290
  %v329 = vunpack.c.l.b16 %v291
  %v330 = vunpack.c.l.b16 %v292
  %v331 = vunpack.c.l.b16 %v293
  %v332 = vpack.c.b16 %v314, %v313
  %v333 = vpack.c.b16 %v316, %v315
  %v334 = vpack.c.b16 %v318, %v317
  %v335 = vpack.c.b16 %v320, %v319
  %v336 = vpack.c.b16 %v322, %v321
  %v337 = vpack.c.b16 %v324, %v323
  %v338 = vpack.c.b16 %v326, %v325
  %v339 = vpack.c.b16 %v328, %v327
  %v340 = vpack.c.b16 %v330, %v329
  %v341 = vpack.c.b16 %v331, %v331
  %v352 = vsel %vm106, %v341, 0
  %354 = vmatprep.subr.bf16.mxu0 0
  %355 = vmatpush1.bf16.msra.mxu0 %v332
  %356 = vmatprep.subr.bf16.mxu0 0
  %357 = vmatpush1.bf16.msra.mxu0 %v333
  %358 = vmatprep.subr.bf16.mxu0 0
  %359 = vmatpush1.bf16.msra.mxu0 %v334
  %360 = vmatprep.subr.bf16.mxu0 0
  %361 = vmatpush1.bf16.msra.mxu0 %v335
  %362 = vmatprep.subr.bf16.mxu0 0
  %363 = vmatpush1.bf16.msra.mxu0 %v336
  %364 = vmatprep.subr.bf16.mxu0 0
  %365 = vmatpush1.bf16.msra.mxu0 %v337
  %366 = vmatprep.subr.bf16.mxu0 0
  %367 = vmatpush1.bf16.msra.mxu0 %v338
  %368 = vmatprep.subr.bf16.mxu0 0
  %369 = vmatpush1.bf16.msra.mxu0 %v339
  %370 = vmatprep.subr.bf16.mxu0 0
  %371 = vmatpush1.bf16.msra.mxu0 %v340
  %372 = vmatprep.subr.bf16.mxu0 0
  %373 = vmatpush1.bf16.msra.mxu0 %v352
  %374 = vmatprep.subr.bf16.mxu0 0
  %375 = vmatpush1.bf16.msra.mxu0 0
  %376 = vmatprep.subr.bf16.mxu0 0
  %377 = vmatpush1.bf16.msra.mxu0 0
  %378 = vmatprep.subr.bf16.mxu0 0
  %379 = vmatpush1.bf16.msra.mxu0 0
  %380 = vmatprep.subr.bf16.mxu0 0
  %381 = vmatpush1.bf16.msra.mxu0 0
  %382 = vmatprep.subr.bf16.mxu0 0
  %383 = vmatpush1.bf16.msra.mxu0 0
  %384 = vmatprep.subr.bf16.mxu0 0
  %385 = vmatpush1.bf16.msra.mxu0 0
  %386 = vmatprep.mubr.bf16.mxu0 %v104
  %387 = vmatmul.mubr.bf16.gmra.mrb[0].mxu0 %v42
  %v388 = vpop.f32.mrb[0].mxu0
  %v389 = vadd.f32 0.0, %v388
  %v390 = vpop.f32.mrb[0].mxu0
  %v391 = vpop.f32.mrb[0].mxu0
  %v392 = vadd.f32 0.0, %v391
  %v393 = vpop.f32.mrb[0].mxu0
  %394 = vdwg.mxu0
  %v395 = vmax.f32 %v272, %v389
  %v396 = vmax.f32 %v273, %v392
  %s397 = scalar_lea.vmem %s2, 228
  %v398 = vld [vmem:[%s397] sm:$0xf]
  %v399 = vld [vmem:[%s397 + $0x4] sm:$0xf]
  %v400 = vld [vmem:[%s397 + $0x8] sm:$0xf]
  %v401 = vld [vmem:[%s397 + $0xc] sm:$0xf]
  %v402 = vld [vmem:[%s397 + $0x10] sm:$0xf]
  %v403 = vld [vmem:[%s397 + $0x14] sm:$0xf]
  %v404 = vld [vmem:[%s397 + $0x18] sm:$0xf]
  %v405 = vld [vmem:[%s397 + $0x1c] sm:$0xf]
  %v406 = vld [vmem:[%s397 + $0x20] sm:$0xf]
  %v407 = vld [vmem:[%s397 + $0x24] sm:$0xf]
  %v408 = vld [vmem:[%s397 + $0x28] sm:$0xf]
  %v409 = vld [vmem:[%s397 + $0x2c] sm:$0xf]
  %v410 = vld [vmem:[%s397 + $0x30] sm:$0xf]
  %v411 = vld [vmem:[%s397 + $0x34] sm:$0xf]
  %v412 = vld [vmem:[%s397 + $0x38] sm:$0xf]
  %v413 = vld [vmem:[%s397 + $0x3c] sm:$0xf]
  %v414 = vld [vmem:[%s397 + $0x40] sm:$0xf]
  %v415 = vld [vmem:[%s397 + $0x44] sm:$0xf]
  %v416 = vld [vmem:[%s397 + $0x48] sm:$0xf]
  %v436 = vunpack.c.l.b16 %v398
  %v437 = vunpack.c.l.b16 %v399
  %v438 = vunpack.c.l.b16 %v400
  %v439 = vunpack.c.l.b16 %v401
  %v440 = vunpack.c.l.b16 %v402
  %v441 = vunpack.c.l.b16 %v403
  %v442 = vunpack.c.l.b16 %v404
  %v443 = vunpack.c.l.b16 %v405
  %v444 = vunpack.c.l.b16 %v406
  %v445 = vunpack.c.l.b16 %v407
  %v446 = vunpack.c.l.b16 %v408
  %v447 = vunpack.c.l.b16 %v409
  %v448 = vunpack.c.l.b16 %v410
  %v449 = vunpack.c.l.b16 %v411
  %v450 = vunpack.c.l.b16 %v412
  %v451 = vunpack.c.l.b16 %v413
  %v452 = vunpack.c.l.b16 %v414
  %v453 = vunpack.c.l.b16 %v415
  %v454 = vunpack.c.l.b16 %v416
  %v455 = vpack.c.b16 %v437, %v436
  %v456 = vpack.c.b16 %v439, %v438
  %v457 = vpack.c.b16 %v441, %v440
  %v458 = vpack.c.b16 %v443, %v442
  %v459 = vpack.c.b16 %v445, %v444
  %v460 = vpack.c.b16 %v447, %v446
  %v461 = vpack.c.b16 %v449, %v448
  %v462 = vpack.c.b16 %v451, %v450
  %v463 = vpack.c.b16 %v453, %v452
  %v464 = vpack.c.b16 %v454, %v454
  %v475 = vsel %vm106, %v464, 0
  %477 = vmatprep.subr.bf16.mxu0 0
  %478 = vmatpush1.bf16.msra.mxu0 %v455
  %479 = vmatprep.subr.bf16.mxu0 0
  %480 = vmatpush1.bf16.msra.mxu0 %v456
  %481 = vmatprep.subr.bf16.mxu0 0
  %482 = vmatpush1.bf16.msra.mxu0 %v457
  %483 = vmatprep.subr.bf16.mxu0 0
  %484 = vmatpush1.bf16.msra.mxu0 %v458
  %485 = vmatprep.subr.bf16.mxu0 0
  %486 = vmatpush1.bf16.msra.mxu0 %v459
  %487 = vmatprep.subr.bf16.mxu0 0
  %488 = vmatpush1.bf16.msra.mxu0 %v460
  %489 = vmatprep.subr.bf16.mxu0 0
  %490 = vmatpush1.bf16.msra.mxu0 %v461
  %491 = vmatprep.subr.bf16.mxu0 0
  %492 = vmatpush1.bf16.msra.mxu0 %v462
  %493 = vmatprep.subr.bf16.mxu0 0
  %494 = vmatpush1.bf16.msra.mxu0 %v463
  %495 = vmatprep.subr.bf16.mxu0 0
  %496 = vmatpush1.bf16.msra.mxu0 %v475
  %497 = vmatprep.subr.bf16.mxu0 0
  %498 = vmatpush1.bf16.msra.mxu0 0
  %499 = vmatprep.subr.bf16.mxu0 0
  %500 = vmatpush1.bf16.msra.mxu0 0
  %501 = vmatprep.subr.bf16.mxu0 0
  %502 = vmatpush1.bf16.msra.mxu0 0
  %503 = vmatprep.subr.bf16.mxu0 0
  %504 = vmatpush1.bf16.msra.mxu0 0
  %505 = vmatprep.subr.bf16.mxu0 0
  %506 = vmatpush1.bf16.msra.mxu0 0
  %507 = vmatprep.subr.bf16.mxu0 0
  %508 = vmatpush1.bf16.msra.mxu0 0
  %509 = vmatprep.mubr.bf16.mxu0 %v104
  %510 = vmatmul.mubr.bf16.gmra.mrb[0].mxu0 %v42
  %v511 = vpop.f32.mrb[0].mxu0
  %v512 = vadd.f32 0.0, %v511
  %v513 = vpop.f32.mrb[0].mxu0
  %v514 = vpop.f32.mrb[0].mxu0
  %v515 = vadd.f32 0.0, %v514
  %v516 = vpop.f32.mrb[0].mxu0
  %517 = vdwg.mxu0
  %v518 = vmax.f32 %v395, %v512
  %v519 = vmax.f32 %v396, %v515
  %v520 = vld [vmem:[%s1] sm:$0xff]
  %v521 = vld [vmem:[%s1 + $0x8] sm:$0xff]
  %523 = vset.pattern.permute.xlu0 0
  %524 = vperm.xlu0 %523, %v520
  %v525 = vpop.permute.xlu0 %524
  %528 = vset.pattern.permute.xlu0 0
  %529 = vperm.xlu0 %528, %v521
  %v530 = vpop.permute.xlu0 %529
  %v532 = vadd.f32 %v518, %v525
  %v533 = vadd.f32 %v519, %v530
  %v534 = vmax.f32 %v532, 0.0
  %v535 = vmax.f32 %v533, 0.0
  %v536 = vpack.c.bf16 %v535, %v534
  %v538 = vunpack.c.l.b16 %v536
  %v539 = vunpack.c.h.b16 %v536
  %v540 = vpack.c.b16 %v538, %v538
  %v541 = vpack.c.b16 %v539, %v539
  %544 = vst [vmem:[%s3] sm:$0xf] %v540
  %545 = vst [vmem:[%s3 + $0x4] sm:$0xf] %v541
  // Predicated region
  $region14: #{convnet_forward.4} parent=0 // pred_check
    _
  $region15: #{convnet_forward.4} parent=0 // pred_check_branch
    %547 = sbr.rel (0) target = $region17
  $region16: #{convnet_forward.4} parent=0 // pred_region
    _
  $region17: #{convnet_forward.4} parent=0 // pred_fallthru
    _
  // Predicated region
  $region18: #{convnet_forward.4} parent=0 // pred_check
    _
  $region19: #{convnet_forward.4} parent=0 // pred_check_branch
    %549 = sbr.rel (0) target = $region21
  $region20: #{convnet_forward.4} parent=0 // pred_region
    _
  $region21: #{convnet_forward.4} parent=0 // pred_fallthru
    _

// kernel: convnet_forward.5
$region0: #{convnet_forward.5}
  #allocation0 [shape = 'u32[]', space=smem, size = 0x4, offset = 0x4, fixed_abs, tag = 'smem constant byte address 0x4 - core index']
  #allocation1 [shape = 'u32[144,128]{1,0:T(1,128)}', space=vmem, size = 0x12000, scoped, tag = 'internal scratch']
  %s0 = inlined_call_operand.vmem [shape: bf16[8,512], index: 0, kind: input, shape index: {}]
  %s1 = inlined_call_operand.vmem [shape: bf16[512,128], index: 1, kind: input, shape index: {}]
  %s2 = inlined_call_operand.vmem [shape: f32[1,128], index: 2, kind: input, shape index: {}]
  %s3 = inlined_call_operand.vmem [shape: bf16[128,128], index: 3, kind: input, shape index: {}]
  %s4 = inlined_call_operand.vmem [shape: f32[1,128], index: 4, kind: input, shape index: {}]
  %s5 = inlined_call_operand.vmem [shape: bf16[128,128], index: 5, kind: input, shape index: {}]
  %s6 = inlined_call_operand.vmem [shape: f32[1,128], index: 6, kind: input, shape index: {}]
  %s7 = inlined_call_operand.vmem [shape: f32[8,128], index: 7, kind: output, shape index: {}]
  %s8 = sld [smem:[#allocation0]]
  $region38: #{convnet_forward.5} parent=0
    _
  %s10 = ssub.s32 1, %s8
  %s11 = scalar_select 0, %s10, %s8
  // Predicated region
  $region2: #{convnet_forward.5} parent=0 // pred_check
    _
  $region3: #{convnet_forward.5} parent=0 // pred_check_branch
    %13 = sbr.rel (0) target = $region5
  $region4: #{convnet_forward.5} parent=0 // pred_region
    _
  $region5: #{convnet_forward.5} parent=0 // pred_fallthru
    _
  // Predicated region
  $region6: #{convnet_forward.5} parent=0 // pred_check
    _
  $region7: #{convnet_forward.5} parent=0 // pred_check_branch
    %15 = sbr.rel (0) target = $region9
  $region8: #{convnet_forward.5} parent=0 // pred_region
    _
  $region9: #{convnet_forward.5} parent=0 // pred_fallthru
    _
  // Predicated region
  $region10: #{convnet_forward.5} parent=0 // pred_check
    _
  $region11: #{convnet_forward.5} parent=0 // pred_check_branch
    %17 = sbr.rel (0) target = $region13
  $region12: #{convnet_forward.5} parent=0 // pred_region
    _
  $region13: #{convnet_forward.5} parent=0 // pred_fallthru
    _
  // Predicated region
  $region14: #{convnet_forward.5} parent=0 // pred_check
    _
  $region15: #{convnet_forward.5} parent=0 // pred_check_branch
    %19 = sbr.rel (0) target = $region17
  $region16: #{convnet_forward.5} parent=0 // pred_region
    _
  $region17: #{convnet_forward.5} parent=0 // pred_fallthru
    _
  // Predicated region
  $region18: #{convnet_forward.5} parent=0 // pred_check
    _
  $region19: #{convnet_forward.5} parent=0 // pred_check_branch
    %21 = sbr.rel (0) target = $region21
  $region20: #{convnet_forward.5} parent=0 // pred_region
    _
  $region21: #{convnet_forward.5} parent=0 // pred_fallthru
    _
  // Predicated region
  $region22: #{convnet_forward.5} parent=0 // pred_check
    _
  $region23: #{convnet_forward.5} parent=0 // pred_check_branch
    %23 = sbr.rel (0) target = $region25
  $region24: #{convnet_forward.5} parent=0 // pred_region
    _
  $region25: #{convnet_forward.5} parent=0 // pred_fallthru
    _
  // Predicated region
  $region26: #{convnet_forward.5} parent=0 // pred_check
    _
  $region27: #{convnet_forward.5} parent=0 // pred_check_branch
    %25 = sbr.rel (0) target = $region29
  $region28: #{convnet_forward.5} parent=0 // pred_region
    _
  $region29: #{convnet_forward.5} parent=0 // pred_fallthru
    _
  %v27 = vld [vmem:[%s0] sm:$0xff]
  %v28 = vld [vmem:[%s0 + $0x8] sm:$0xff]
  %v29 = vld [vmem:[%s1] sm:$0xf]
  %v30 = vld [vmem:[%s1 + $0x4] sm:$0xf]
  %v31 = vld [vmem:[%s1 + $0x8] sm:$0xf]
  %v32 = vld [vmem:[%s1 + $0xc] sm:$0xf]
  %v33 = vld [vmem:[%s1 + $0x10] sm:$0xf]
  %v34 = vld [vmem:[%s1 + $0x14] sm:$0xf]
  %v35 = vld [vmem:[%s1 + $0x18] sm:$0xf]
  %v36 = vld [vmem:[%s1 + $0x1c] sm:$0xf]
  %v37 = vld [vmem:[%s1 + $0x20] sm:$0xf]
  %v38 = vld [vmem:[%s1 + $0x24] sm:$0xf]
  %v39 = vld [vmem:[%s1 + $0x28] sm:$0xf]
  %v40 = vld [vmem:[%s1 + $0x2c] sm:$0xf]
  %v41 = vld [vmem:[%s1 + $0x30] sm:$0xf]
  %v42 = vld [vmem:[%s1 + $0x34] sm:$0xf]
  %v43 = vld [vmem:[%s1 + $0x38] sm:$0xf]
  %v44 = vld [vmem:[%s1 + $0x3c] sm:$0xf]
  %v45 = vld [vmem:[%s1 + $0x40] sm:$0xf]
  %v46 = vld [vmem:[%s1 + $0x44] sm:$0xf]
  %v47 = vld [vmem:[%s1 + $0x48] sm:$0xf]
  %v48 = vld [vmem:[%s1 + $0x4c] sm:$0xf]
  %v49 = vld [vmem:[%s1 + $0x50] sm:$0xf]
  %v50 = vld [vmem:[%s1 + $0x54] sm:$0xf]
  %v51 = vld [vmem:[%s1 + $0x58] sm:$0xf]
  %v52 = vld [vmem:[%s1 + $0x5c] sm:$0xf]
  %v53 = vld [vmem:[%s1 + $0x60] sm:$0xf]
  %v54 = vld [vmem:[%s1 + $0x64] sm:$0xf]
  %v55 = vld [vmem:[%s1 + $0x68] sm:$0xf]
  %v56 = vld [vmem:[%s1 + $0x6c] sm:$0xf]
  %v57 = vld [vmem:[%s1 + $0x70] sm:$0xf]
  %v58 = vld [vmem:[%s1 + $0x74] sm:$0xf]
  %v59 = vld [vmem:[%s1 + $0x78] sm:$0xf]
  %v60 = vld [vmem:[%s1 + $0x7c] sm:$0xf]
  %v61 = vld [vmem:[%s1 + $0x80] sm:$0xf]
  %v62 = vld [vmem:[%s1 + $0x84] sm:$0xf]
  %v63 = vld [vmem:[%s1 + $0x88] sm:$0xf]
  %v64 = vld [vmem:[%s1 + $0x8c] sm:$0xf]
  %v65 = vld [vmem:[%s1 + $0x90] sm:$0xf]
  %v66 = vld [vmem:[%s1 + $0x94] sm:$0xf]
  %v67 = vld [vmem:[%s1 + $0x98] sm:$0xf]
  %v68 = vld [vmem:[%s1 + $0x9c] sm:$0xf]
  %v69 = vld [vmem:[%s1 + $0xa0] sm:$0xf]
  %v70 = vld [vmem:[%s1 + $0xa4] sm:$0xf]
  %v71 = vld [vmem:[%s1 + $0xa8] sm:$0xf]
  %v72 = vld [vmem:[%s1 + $0xac] sm:$0xf]
  %v73 = vld [vmem:[%s1 + $0xb0] sm:$0xf]
  %v74 = vld [vmem:[%s1 + $0xb4] sm:$0xf]
  %v75 = vld [vmem:[%s1 + $0xb8] sm:$0xf]
  %v76 = vld [vmem:[%s1 + $0xbc] sm:$0xf]
  %v77 = vld [vmem:[%s1 + $0xc0] sm:$0xf]
  %v78 = vld [vmem:[%s1 + $0xc4] sm:$0xf]
  %v79 = vld [vmem:[%s1 + $0xc8] sm:$0xf]
  %v80 = vld [vmem:[%s1 + $0xcc] sm:$0xf]
  %v81 = vld [vmem:[%s1 + $0xd0] sm:$0xf]
  %v82 = vld [vmem:[%s1 + $0xd4] sm:$0xf]
  %v83 = vld [vmem:[%s1 + $0xd8] sm:$0xf]
  %v84 = vld [vmem:[%s1 + $0xdc] sm:$0xf]
  %v85 = vld [vmem:[%s1 + $0xe0] sm:$0xf]
  %v86 = vld [vmem:[%s1 + $0xe4] sm:$0xf]
  %v87 = vld [vmem:[%s1 + $0xe8] sm:$0xf]
  %v88 = vld [vmem:[%s1 + $0xec] sm:$0xf]
  %v89 = vld [vmem:[%s1 + $0xf0] sm:$0xf]
  %v90 = vld [vmem:[%s1 + $0xf4] sm:$0xf]
  %v91 = vld [vmem:[%s1 + $0xf8] sm:$0xf]
  %v92 = vld [vmem:[%s1 + $0xfc] sm:$0xf]
  %v93 = vld [vmem:[%s2] sm:$0x1]
  %v95 = vlaneseq
  %v96 = vshrl.u32 %v95, 7
  %v97 = vsub.s32 0, %v96
  %v98 = vrot.slane %v93, %v97
  %v102 = vunpack.c.l.b16 %v27
  %v103 = vunpack.c.h.b16 %v27
  %v104 = vunpack.c.l.b16 %v28
  %v105 = vunpack.c.h.b16 %v28
  %v106 = vpack.c.b16 %v102, %v102
  %v107 = vpack.c.b16 %v103, %v103
  %v108 = vpack.c.b16 %v104, %v104
  %v109 = vpack.c.b16 %v105, %v105
  %v178 = vunpack.c.l.b16 %v29
  %v179 = vunpack.c.l.b16 %v30
  %v180 = vunpack.c.l.b16 %v31
  %v181 = vunpack.c.l.b16 %v32
  %v182 = vunpack.c.l.b16 %v33
  %v183 = vunpack.c.l.b16 %v34
  %v184 = vunpack.c.l.b16 %v35
  %v185 = vunpack.c.l.b16 %v36
  %v186 = vunpack.c.l.b16 %v37
  %v187 = vunpack.c.l.b16 %v38
  %v188 = vunpack.c.l.b16 %v39
  %v189 = vunpack.c.l.b16 %v40
  %v190 = vunpack.c.l.b16 %v41
  %v191 = vunpack.c.l.b16 %v42
  %v192 = vunpack.c.l.b16 %v43
  %v193 = vunpack.c.l.b16 %v44
  %v194 = vunpack.c.l.b16 %v45
  %v195 = vunpack.c.l.b16 %v46
  %v196 = vunpack.c.l.b16 %v47
  %v197 = vunpack.c.l.b16 %v48
  %v198 = vunpack.c.l.b16 %v49
  %v199 = vunpack.c.l.b16 %v50
  %v200 = vunpack.c.l.b16 %v51
  %v201 = vunpack.c.l.b16 %v52
  %v202 = vunpack.c.l.b16 %v53
  %v203 = vunpack.c.l.b16 %v54
  %v204 = vunpack.c.l.b16 %v55
  %v205 = vunpack.c.l.b16 %v56
  %v206 = vunpack.c.l.b16 %v57
  %v207 = vunpack.c.l.b16 %v58
  %v208 = vunpack.c.l.b16 %v59
  %v209 = vunpack.c.l.b16 %v60
  %v210 = vunpack.c.l.b16 %v61
  %v211 = vunpack.c.l.b16 %v62
  %v212 = vunpack.c.l.b16 %v63
  %v213 = vunpack.c.l.b16 %v64
  %v214 = vunpack.c.l.b16 %v65
  %v215 = vunpack.c.l.b16 %v66
  %v216 = vunpack.c.l.b16 %v67
  %v217 = vunpack.c.l.b16 %v68
  %v218 = vunpack.c.l.b16 %v69
  %v219 = vunpack.c.l.b16 %v70
  %v220 = vunpack.c.l.b16 %v71
  %v221 = vunpack.c.l.b16 %v72
  %v222 = vunpack.c.l.b16 %v73
  %v223 = vunpack.c.l.b16 %v74
  %v224 = vunpack.c.l.b16 %v75
  %v225 = vunpack.c.l.b16 %v76
  %v226 = vunpack.c.l.b16 %v77
  %v227 = vunpack.c.l.b16 %v78
  %v228 = vunpack.c.l.b16 %v79
  %v229 = vunpack.c.l.b16 %v80
  %v230 = vunpack.c.l.b16 %v81
  %v231 = vunpack.c.l.b16 %v82
  %v232 = vunpack.c.l.b16 %v83
  %v233 = vunpack.c.l.b16 %v84
  %v234 = vunpack.c.l.b16 %v85
  %v235 = vunpack.c.l.b16 %v86
  %v236 = vunpack.c.l.b16 %v87
  %v237 = vunpack.c.l.b16 %v88
  %v238 = vunpack.c.l.b16 %v89
  %v239 = vunpack.c.l.b16 %v90
  %v240 = vunpack.c.l.b16 %v91
  %v241 = vunpack.c.l.b16 %v92
  %v242 = vpack.c.b16 %v179, %v178
  %v243 = vpack.c.b16 %v181, %v180
  %v244 = vpack.c.b16 %v183, %v182
  %v245 = vpack.c.b16 %v185, %v184
  %v246 = vpack.c.b16 %v187, %v186
  %v247 = vpack.c.b16 %v189, %v188
  %v248 = vpack.c.b16 %v191, %v190
  %v249 = vpack.c.b16 %v193, %v192
  %v250 = vpack.c.b16 %v195, %v194
  %v251 = vpack.c.b16 %v197, %v196
  %v252 = vpack.c.b16 %v199, %v198
  %v253 = vpack.c.b16 %v201, %v200
  %v254 = vpack.c.b16 %v203, %v202
  %v255 = vpack.c.b16 %v205, %v204
  %v256 = vpack.c.b16 %v207, %v206
  %v257 = vpack.c.b16 %v209, %v208
  %v258 = vpack.c.b16 %v211, %v210
  %v259 = vpack.c.b16 %v213, %v212
  %v260 = vpack.c.b16 %v215, %v214
  %v261 = vpack.c.b16 %v217, %v216
  %v262 = vpack.c.b16 %v219, %v218
  %v263 = vpack.c.b16 %v221, %v220
  %v264 = vpack.c.b16 %v223, %v222
  %v265 = vpack.c.b16 %v225, %v224
  %v266 = vpack.c.b16 %v227, %v226
  %v267 = vpack.c.b16 %v229, %v228
  %v268 = vpack.c.b16 %v231, %v230
  %v269 = vpack.c.b16 %v233, %v232
  %v270 = vpack.c.b16 %v235, %v234
  %v271 = vpack.c.b16 %v237, %v236
  %v272 = vpack.c.b16 %v239, %v238
  %v273 = vpack.c.b16 %v241, %v240
  %306 = vmatprep.subr.bf16.mxu0 0
  %307 = vmatpush1.bf16.msra.mxu0 %v242
  %308 = vmatprep.subr.bf16.mxu0 0
  %309 = vmatpush1.bf16.msra.mxu0 %v243
  %310 = vmatprep.subr.bf16.mxu0 0
  %311 = vmatpush1.bf16.msra.mxu0 %v244
  %312 = vmatprep.subr.bf16.mxu0 0
  %313 = vmatpush1.bf16.msra.mxu0 %v245
  %314 = vmatprep.subr.bf16.mxu0 0
  %315 = vmatpush1.bf16.msra.mxu0 %v246
  %316 = vmatprep.subr.bf16.mxu0 0
  %317 = vmatpush1.bf16.msra.mxu0 %v247
  %318 = vmatprep.subr.bf16.mxu0 0
  %319 = vmatpush1.bf16.msra.mxu0 %v248
  %320 = vmatprep.subr.bf16.mxu0 0
  %321 = vmatpush1.bf16.msra.mxu0 %v249
  %322 = vmatprep.subr.bf16.mxu0 0
  %323 = vmatpush1.bf16.msra.mxu0 %v250
  %324 = vmatprep.subr.bf16.mxu0 0
  %325 = vmatpush1.bf16.msra.mxu0 %v251
  %326 = vmatprep.subr.bf16.mxu0 0
  %327 = vmatpush1.bf16.msra.mxu0 %v252
  %328 = vmatprep.subr.bf16.mxu0 0
  %329 = vmatpush1.bf16.msra.mxu0 %v253
  %330 = vmatprep.subr.bf16.mxu0 0
  %331 = vmatpush1.bf16.msra.mxu0 %v254
  %332 = vmatprep.subr.bf16.mxu0 0
  %333 = vmatpush1.bf16.msra.mxu0 %v255
  %334 = vmatprep.subr.bf16.mxu0 0
  %335 = vmatpush1.bf16.msra.mxu0 %v256
  %336 = vmatprep.subr.bf16.mxu0 0
  %337 = vmatpush1.bf16.msra.mxu0 %v257
  %338 = vmatprep.mubr.bf16.mxu0 %v107
  %339 = vmatmul.mubr.bf16.gmra.mrb[0].mxu0 %v106
  %v340 = vpop.f32.mrb[0].mxu0
  %v341 = vadd.f32 %v98, %v340
  %v342 = vpop.f32.mrb[0].mxu0
  %v343 = vpop.f32.mrb[0].mxu0
  %v344 = vpop.f32.mrb[0].mxu0
  %345 = vdwg.mxu0
  %346 = vmatprep.subr.bf16.mxu0 0
  %347 = vmatpush1.bf16.msra.mxu0 %v258
  %348 = vmatprep.subr.bf16.mxu0 0
  %349 = vmatpush1.bf16.msra.mxu0 %v259
  %350 = vmatprep.subr.bf16.mxu0 0
  %351 = vmatpush1.bf16.msra.mxu0 %v260
  %352 = vmatprep.subr.bf16.mxu0 0
  %353 = vmatpush1.bf16.msra.mxu0 %v261
  %354 = vmatprep.subr.bf16.mxu0 0
  %355 = vmatpush1.bf16.msra.mxu0 %v262
  %356 = vmatprep.subr.bf16.mxu0 0
  %357 = vmatpush1.bf16.msra.mxu0 %v263
  %358 = vmatprep.subr.bf16.mxu0 0
  %359 = vmatpush1.bf16.msra.mxu0 %v264
  %360 = vmatprep.subr.bf16.mxu0 0
  %361 = vmatpush1.bf16.msra.mxu0 %v265
  %362 = vmatprep.subr.bf16.mxu0 0
  %363 = vmatpush1.bf16.msra.mxu0 %v266
  %364 = vmatprep.subr.bf16.mxu0 0
  %365 = vmatpush1.bf16.msra.mxu0 %v267
  %366 = vmatprep.subr.bf16.mxu0 0
  %367 = vmatpush1.bf16.msra.mxu0 %v268
  %368 = vmatprep.subr.bf16.mxu0 0
  %369 = vmatpush1.bf16.msra.mxu0 %v269
  %370 = vmatprep.subr.bf16.mxu0 0
  %371 = vmatpush1.bf16.msra.mxu0 %v270
  %372 = vmatprep.subr.bf16.mxu0 0
  %373 = vmatpush1.bf16.msra.mxu0 %v271
  %374 = vmatprep.subr.bf16.mxu0 0
  %375 = vmatpush1.bf16.msra.mxu0 %v272
  %376 = vmatprep.subr.bf16.mxu0 0
  %377 = vmatpush1.bf16.msra.mxu0 %v273
  %378 = vmatprep.mubr.bf16.mxu0 %v109
  %379 = vmatmul.mubr.bf16.gmra.mrb[0].mxu0 %v108
  %v380 = vpop.f32.mrb[0].mxu0
  %v381 = vadd.f32 %v341, %v380
  %v382 = vpop.f32.mrb[0].mxu0
  %v383 = vpop.f32.mrb[0].mxu0
  %v384 = vpop.f32.mrb[0].mxu0
  %385 = vdwg.mxu0
  %v386 = vmax.f32 %v381, 0.0
  %v387 = vpack.c.bf16 %v386, %v386
  %v388 = vld [vmem:[%s3] sm:$0xf]
  %v389 = vld [vmem:[%s3 + $0x4] sm:$0xf]
  %v390 = vld [vmem:[%s3 + $0x8] sm:$0xf]
  %v391 = vld [vmem:[%s3 + $0xc] sm:$0xf]
  %v392 = vld [vmem:[%s3 + $0x10] sm:$0xf]
  %v393 = vld [vmem:[%s3 + $0x14] sm:$0xf]
  %v394 = vld [vmem:[%s3 + $0x18] sm:$0xf]
  %v395 = vld [vmem:[%s3 + $0x1c] sm:$0xf]
  %v396 = vld [vmem:[%s3 + $0x20] sm:$0xf]
  %v397 = vld [vmem:[%s3 + $0x24] sm:$0xf]
  %v398 = vld [vmem:[%s3 + $0x28] sm:$0xf]
  %v399 = vld [vmem:[%s3 + $0x2c] sm:$0xf]
  %v400 = vld [vmem:[%s3 + $0x30] sm:$0xf]
  %v401 = vld [vmem:[%s3 + $0x34] sm:$0xf]
  %v402 = vld [vmem:[%s3 + $0x38] sm:$0xf]
  %v403 = vld [vmem:[%s3 + $0x3c] sm:$0xf]
  %v404 = vld [vmem:[%s4] sm:$0x1]
  %v406 = vlaneseq
  %v407 = vshrl.u32 %v406, 7
  %v408 = vsub.s32 0, %v407
  %v409 = vrot.slane %v404, %v408
  %v427 = vunpack.c.l.b16 %v388
  %v428 = vunpack.c.l.b16 %v389
  %v429 = vunpack.c.l.b16 %v390
  %v430 = vunpack.c.l.b16 %v391
  %v431 = vunpack.c.l.b16 %v392
  %v432 = vunpack.c.l.b16 %v393
  %v433 = vunpack.c.l.b16 %v394
  %v434 = vunpack.c.l.b16 %v395
  %v435 = vunpack.c.l.b16 %v396
  %v436 = vunpack.c.l.b16 %v397
  %v437 = vunpack.c.l.b16 %v398
  %v438 = vunpack.c.l.b16 %v399
  %v439 = vunpack.c.l.b16 %v400
  %v440 = vunpack.c.l.b16 %v401
  %v441 = vunpack.c.l.b16 %v402
  %v442 = vunpack.c.l.b16 %v403
  %v443 = vpack.c.b16 %v428, %v427
  %v444 = vpack.c.b16 %v430, %v429
  %v445 = vpack.c.b16 %v432, %v431
  %v446 = vpack.c.b16 %v434, %v433
  %v447 = vpack.c.b16 %v436, %v435
  %v448 = vpack.c.b16 %v438, %v437
  %v449 = vpack.c.b16 %v440, %v439
  %v450 = vpack.c.b16 %v442, %v441
  %459 = vmatprep.subr.bf16.mxu0 0
  %460 = vmatpush1.bf16.msra.mxu0 %v443
  %461 = vmatprep.subr.bf16.mxu0 0
  %462 = vmatpush1.bf16.msra.mxu0 %v444
  %463 = vmatprep.subr.bf16.mxu0 0
  %464 = vmatpush1.bf16.msra.mxu0 %v445
  %465 = vmatprep.subr.bf16.mxu0 0
  %466 = vmatpush1.bf16.msra.mxu0 %v446
  %467 = vmatprep.subr.bf16.mxu0 0
  %468 = vmatpush1.bf16.msra.mxu0 %v447
  %469 = vmatprep.subr.bf16.mxu0 0
  %470 = vmatpush1.bf16.msra.mxu0 %v448
  %471 = vmatprep.subr.bf16.mxu0 0
  %472 = vmatpush1.bf16.msra.mxu0 %v449
  %473 = vmatprep.subr.bf16.mxu0 0
  %474 = vmatpush1.bf16.msra.mxu0 %v450
  %475 = vmatprep.subr.bf16.mxu0 0
  %476 = vmatpush1.bf16.msra.mxu0 0
  %477 = vmatprep.subr.bf16.mxu0 0
  %478 = vmatpush1.bf16.msra.mxu0 0
  %479 = vmatprep.subr.bf16.mxu0 0
  %480 = vmatpush1.bf16.msra.mxu0 0
  %481 = vmatprep.subr.bf16.mxu0 0
  %482 = vmatpush1.bf16.msra.mxu0 0
  %483 = vmatprep.subr.bf16.mxu0 0
  %484 = vmatpush1.bf16.msra.mxu0 0
  %485 = vmatprep.subr.bf16.mxu0 0
  %486 = vmatpush1.bf16.msra.mxu0 0
  %487 = vmatprep.subr.bf16.mxu0 0
  %488 = vmatpush1.bf16.msra.mxu0 0
  %489 = vmatprep.subr.bf16.mxu0 0
  %490 = vmatpush1.bf16.msra.mxu0 0
  %491 = vmatprep.mubr.bf16.mxu0 0
  %492 = vmatmul.mubr.bf16.gmra.mrb[0].mxu0 %v387
  %v493 = vpop.f32.mrb[0].mxu0
  %v494 = vadd.f32 %v409, %v493
  %v495 = vpop.f32.mrb[0].mxu0
  %v496 = vpop.f32.mrb[0].mxu0
  %v497 = vpop.f32.mrb[0].mxu0
  %498 = vdwg.mxu0
  %v499 = vmax.f32 %v494, 0.0
  %v500 = vpack.c.bf16 %v499, %v499
  %v501 = vld [vmem:[%s5] sm:$0xf]
  %v502 = vld [vmem:[%s5 + $0x4] sm:$0xf]
  %v503 = vld [vmem:[%s5 + $0x8] sm:$0xf]
  %v504 = vld [vmem:[%s5 + $0xc] sm:$0xf]
  %v505 = vld [vmem:[%s5 + $0x10] sm:$0xf]
  %v506 = vld [vmem:[%s5 + $0x14] sm:$0xf]
  %v507 = vld [vmem:[%s5 + $0x18] sm:$0xf]
  %v508 = vld [vmem:[%s5 + $0x1c] sm:$0xf]
  %v509 = vld [vmem:[%s5 + $0x20] sm:$0xf]
  %v510 = vld [vmem:[%s5 + $0x24] sm:$0xf]
  %v511 = vld [vmem:[%s5 + $0x28] sm:$0xf]
  %v512 = vld [vmem:[%s5 + $0x2c] sm:$0xf]
  %v513 = vld [vmem:[%s5 + $0x30] sm:$0xf]
  %v514 = vld [vmem:[%s5 + $0x34] sm:$0xf]
  %v515 = vld [vmem:[%s5 + $0x38] sm:$0xf]
  %v516 = vld [vmem:[%s5 + $0x3c] sm:$0xf]
  %v517 = vld [vmem:[%s6] sm:$0x1]
  %v519 = vlaneseq
  %v520 = vshrl.u32 %v519, 7
  %v521 = vsub.s32 0, %v520
  %v522 = vrot.slane %v517, %v521
  %v540 = vunpack.c.l.b16 %v501
  %v541 = vunpack.c.l.b16 %v502
  %v542 = vunpack.c.l.b16 %v503
  %v543 = vunpack.c.l.b16 %v504
  %v544 = vunpack.c.l.b16 %v505
  %v545 = vunpack.c.l.b16 %v506
  %v546 = vunpack.c.l.b16 %v507
  %v547 = vunpack.c.l.b16 %v508
  %v548 = vunpack.c.l.b16 %v509
  %v549 = vunpack.c.l.b16 %v510
  %v550 = vunpack.c.l.b16 %v511
  %v551 = vunpack.c.l.b16 %v512
  %v552 = vunpack.c.l.b16 %v513
  %v553 = vunpack.c.l.b16 %v514
  %v554 = vunpack.c.l.b16 %v515
  %v555 = vunpack.c.l.b16 %v516
  %v556 = vpack.c.b16 %v541, %v540
  %v557 = vpack.c.b16 %v543, %v542
  %v558 = vpack.c.b16 %v545, %v544
  %v559 = vpack.c.b16 %v547, %v546
  %v560 = vpack.c.b16 %v549, %v548
  %v561 = vpack.c.b16 %v551, %v550
  %v562 = vpack.c.b16 %v553, %v552
  %v563 = vpack.c.b16 %v555, %v554
  %572 = vmatprep.subr.bf16.mxu0 0
  %573 = vmatpush1.bf16.msra.mxu0 %v556
  %574 = vmatprep.subr.bf16.mxu0 0
  %575 = vmatpush1.bf16.msra.mxu0 %v557
  %576 = vmatprep.subr.bf16.mxu0 0
  %577 = vmatpush1.bf16.msra.mxu0 %v558
  %578 = vmatprep.subr.bf16.mxu0 0
  %579 = vmatpush1.bf16.msra.mxu0 %v559
  %580 = vmatprep.subr.bf16.mxu0 0
  %581 = vmatpush1.bf16.msra.mxu0 %v560
  %582 = vmatprep.subr.bf16.mxu0 0
  %583 = vmatpush1.bf16.msra.mxu0 %v561
  %584 = vmatprep.subr.bf16.mxu0 0
  %585 = vmatpush1.bf16.msra.mxu0 %v562
  %586 = vmatprep.subr.bf16.mxu0 0
  %587 = vmatpush1.bf16.msra.mxu0 %v563
  %588 = vmatprep.subr.bf16.mxu0 0
  %589 = vmatpush1.bf16.msra.mxu0 0
  %590 = vmatprep.subr.bf16.mxu0 0
  %591 = vmatpush1.bf16.msra.mxu0 0
  %592 = vmatprep.subr.bf16.mxu0 0
  %593 = vmatpush1.bf16.msra.mxu0 0
  %594 = vmatprep.subr.bf16.mxu0 0
  %595 = vmatpush1.bf16.msra.mxu0 0
  %596 = vmatprep.subr.bf16.mxu0 0
  %597 = vmatpush1.bf16.msra.mxu0 0
  %598 = vmatprep.subr.bf16.mxu0 0
  %599 = vmatpush1.bf16.msra.mxu0 0
  %600 = vmatprep.subr.bf16.mxu0 0
  %601 = vmatpush1.bf16.msra.mxu0 0
  %602 = vmatprep.subr.bf16.mxu0 0
  %603 = vmatpush1.bf16.msra.mxu0 0
  %604 = vmatprep.mubr.bf16.mxu0 0
  %605 = vmatmul.mubr.bf16.gmra.mrb[0].mxu0 %v500
  %v606 = vpop.f32.mrb[0].mxu0
  %v607 = vadd.f32 %v522, %v606
  %v608 = vpop.f32.mrb[0].mxu0
  %v609 = vpop.f32.mrb[0].mxu0
  %v610 = vpop.f32.mrb[0].mxu0
  %611 = vdwg.mxu0
  %612 = vst [vmem:[%s7] sm:$0xff] %v607
  // Predicated region
  $region30: #{convnet_forward.5} parent=0 // pred_check
    _
  $region31: #{convnet_forward.5} parent=0 // pred_check_branch
    %614 = sbr.rel (0) target = $region33
  $region32: #{convnet_forward.5} parent=0 // pred_region
    _
  $region33: #{convnet_forward.5} parent=0 // pred_fallthru
    _
  // Predicated region
  $region34: #{convnet_forward.5} parent=0 // pred_check
    _
  $region35: #{convnet_forward.5} parent=0 // pred_check_branch
    %616 = sbr.rel (0) target = $region37
  $region36: #{convnet_forward.5} parent=0 // pred_region
    _
  $region37: #{convnet_forward.5} parent=0 // pred_fallthru
    _

</llo_original>
